<compile_context>
chip_gen: v5e
topology: v5e:2x2
jax: 0.10.0
libtpu: 0.0.40
codegen_flags: <defaults>
</compile_context>

<pallas_src>
import jax
import jax.numpy as jnp
from jax.experimental import pallas as pl
from jax.experimental.pallas import tpu as pltpu


def ncf_rec_kernel(u_ref, i_ref,
                   w1u_ref, w1i_ref, b1_ref, w2_ref, b2_ref, w3_ref, b3_ref,
                   whead_ref, out_ref):
    mxu_dt = w1u_ref.dtype                    # f32 or bf16, set wrapper-side
    dm = w1u_ref.shape[0]                     # MLP embedding width (4F)

    u = u_ref[...]                            # (TB, 4F + F)  [eu_m | eu_g]
    i = i_ref[...]                            # (TB, 4F + F)  [ei_m | ei_g]

    # ----- GMF branch: elementwise product in f32 (v5e has no bf16 VPU) -----
    gmf = u[:, dm:].astype(jnp.float32) * i[:, dm:].astype(jnp.float32)     # (TB, F)

    # ----- MLP branch (nn.Dropout is identity in eval mode) -----
    # TODO(synk): training-mode dropout (random masking) is not modeled here.
    # layer 1: concat-free -> two MXU accumulates on the split w1.
    h = jnp.dot(u[:, :dm].astype(mxu_dt), w1u_ref[...],
                preferred_element_type=jnp.float32)
    h = h + jnp.dot(i[:, :dm].astype(mxu_dt), w1i_ref[...],
                    preferred_element_type=jnp.float32)
    h = jnp.maximum(h + b1_ref[...], 0.0)                                   # (TB, 4F)
    h = jnp.maximum(
        jnp.dot(h.astype(mxu_dt), w2_ref[...],
                preferred_element_type=jnp.float32) + b2_ref[...], 0.0)     # (TB, 2F)
    h = jnp.maximum(
        jnp.dot(h.astype(mxu_dt), w3_ref[...],
                preferred_element_type=jnp.float32) + b3_ref[...], 0.0)     # (TB, F)

    # ----- prediction head: VPU multiply + lane reduce (no concat, no N=1 matmul) -----
    p = gmf * whead_ref[0:1, :] + h * whead_ref[1:2, :]                     # (TB, F) f32
    out_ref[...] = jnp.sum(p, axis=-1).reshape(1, -1)                       # (1, TB) lane-dense


def ncf_rec_forward(user, item, params, *, block_batch=2048,
                    embed_dtype=jnp.bfloat16, mxu_dtype=jnp.bfloat16,
                    in_buffers=3, core_parallel=False):
    """flag==1 path of NCF.forward: returns rec_prediction of shape (B,).

    core_parallel=True marks the batch axis pltpu.CORE_PARALLEL (use on v7x to
    split tiles across both TensorCores); default False for single-TC v5e/v6e.
    """
    assert block_batch % 128 == 0, "block_batch must be a multiple of 128"
    B = user.shape[0]
    TB = int(block_batch)
    num_tiles = pl.cdiv(B, TB)
    B_pad = num_tiles * TB

    F = params["embed_user_GMF"].shape[1]
    Dm = params["embed_user_MLP"].shape[1]                    # 4F
    W = Dm + F                                                 # packed row width

    # ----- glue: pack tables per entity, pad indices, single gather per entity -----
    # Packed layout [MLP | GMF] keeps one contiguous gathered row per entity; tables
    # (and hence gathered rows) stored in embed_dtype (bf16 default) halves HBM bytes.
    # TODO(synk): fully fusing the gather into the kernel (scalar-prefetch indices +
    # VMEM-resident or DMA-gathered tables) needs an efficient Mosaic row-gather for
    # these 160-320 B rows to beat the XLA gather; kept as wrapper glue for now.
    user_p = jnp.pad(user, (0, B_pad - B))
    item_p = jnp.pad(item, (0, B_pad - B))
    user_table = jnp.concatenate(
        [params["embed_user_MLP"], params["embed_user_GMF"]], axis=1).astype(embed_dtype)
    item_table = jnp.concatenate(
        [params["embed_item_MLP"], params["embed_item_GMF"]], axis=1).astype(embed_dtype)
    u_rows = jnp.take(user_table, user_p, axis=0)              # (B_pad, 4F+F)
    i_rows = jnp.take(item_table, item_p, axis=0)              # (B_pad, 4F+F)

    # concat-free weight splits; MXU operands in mxu_dtype, VPU operands in f32.
    w1 = params["w1"]
    w1u = w1[:Dm].astype(mxu_dtype)                            # (4F, 4F)
    w1i = w1[Dm:].astype(mxu_dtype)                            # (4F, 4F)
    w2 = params["w2"].astype(mxu_dtype)                        # (4F, 2F)
    w3 = params["w3"].astype(mxu_dtype)                        # (2F, F)
    wp = params["wp"]                                          # (2F, 1) f32
    whead = jnp.concatenate([wp[:F].reshape(1, F),
                             wp[F:].reshape(1, F)], axis=0)    # (2, F): [wpg; wpm]
    b1, b2, b3 = params["b1"], params["b2"], params["b3"]
    weight_ops = [w1u, w1i, b1, w2, b2, w3, b3, whead]

    # rough lane-padded VMEM budget; raise the scoped limit only when big f32 tiles
    # would exceed v5e's 16 MiB default (v6e/v7x defaults are fine for bf16 tiles).
    lanes = 128 * pl.cdiv(W, 128)
    nbuf = in_buffers if in_buffers else 2
    est = 2 * nbuf * TB * lanes * jnp.dtype(embed_dtype).itemsize   # batch streams
    est += 2 * TB * 4 * 4                                           # (1, TB) f32 output
    est += 4 * sum(int(w.size) * w.dtype.itemsize for w in weight_ops)
    vmem_limit = int(1.5 * est) if est > (12 << 20) else None

    sem = (pltpu.CORE_PARALLEL,) if core_parallel else ("parallel",)

    def run(pipeline_mode):
        kw = {} if pipeline_mode is None else {"pipeline_mode": pipeline_mode}
        batch_specs = [pl.BlockSpec((TB, W), lambda i: (i, 0), **kw),
                       pl.BlockSpec((TB, W), lambda i: (i, 0), **kw)]
        # weights / biases: full block + constant index map -> VMEM-resident across grid.
        weight_specs = [pl.BlockSpec(w.shape, lambda i: (0, 0)) for w in weight_ops]
        return pl.pallas_call(
            ncf_rec_kernel,
            out_shape=jax.ShapeDtypeStruct((1, B_pad), jnp.float32),
            grid=(num_tiles,),
            in_specs=batch_specs + weight_specs,
            out_specs=pl.BlockSpec((1, TB), lambda i: (0, i)),
            compiler_params=pltpu.CompilerParams(
                dimension_semantics=sem,
                vmem_limit_bytes=vmem_limit),
        )(u_rows, i_rows, *weight_ops)

    if in_buffers and in_buffers != 2:
        try:
            out = run(pl.Buffered(in_buffers))       # deeper input pipelining
        except Exception:                            # fallback: default double buffering
            out = run(None)
    else:
        out = run(None)

    # scalar predict-layer bias folded here (removes a (1,1) VMEM operand per step).
    return out.reshape(-1)[:B] + params["bp"][0, 0]


def ncf_rec_reference(user, item, params):
    """Pure-JAX f32 reference of the same forward path."""
    eu_g = params["embed_user_GMF"][user]
    ei_g = params["embed_item_GMF"][item]
    gmf = eu_g * ei_g
    x = jnp.concatenate([params["embed_user_MLP"][user],
                         params["embed_item_MLP"][item]], axis=-1)
    x = jnp.maximum(x @ params["w1"] + params["b1"], 0.0)
    x = jnp.maximum(x @ params["w2"] + params["b2"], 0.0)
    x = jnp.maximum(x @ params["w3"] + params["b3"], 0.0)
    concat = jnp.concatenate([gmf, x], axis=-1)
    return (concat @ params["wp"] + params["bp"]).reshape(-1)


def init_params(key, user_num, item_num, factor_num, num_layers):
    """Deterministic synthetic init mirroring NCF.init_weight shapes (num_layers=3)."""
    keys = jax.random.split(key, 16)
    f = factor_num
    mlp_dim = f * 2 ** (num_layers - 1)            # embed_*_MLP width (4F)

    def xavier(k, shape):
        fan_in, fan_out = shape
        limit = jnp.sqrt(6.0 / (fan_in + fan_out))
        return jax.random.uniform(k, shape, jnp.float32, -limit, limit)

    d0 = f * 2 ** num_layers                       # 8F = MLP layer-1 input width
    params = {
        # embeddings: normal(std=0.01), user table has user_num + 1 rows
        "embed_user_GMF": 0.01 * jax.random.normal(keys[0], (user_num + 1, f), jnp.float32),
        "embed_item_GMF": 0.01 * jax.random.normal(keys[1], (item_num, f), jnp.float32),
        "embed_user_MLP": 0.01 * jax.random.normal(keys[2], (user_num + 1, mlp_dim), jnp.float32),
        "embed_item_MLP": 0.01 * jax.random.normal(keys[3], (item_num, mlp_dim), jnp.float32),
        # MLP linears (xavier uniform), stored transposed (in, out); biases zero.
        "w1": xavier(keys[4], (d0, d0 // 2)),
        "b1": jnp.zeros((1, d0 // 2), jnp.float32),
        "w2": xavier(keys[5], (d0 // 2, d0 // 4)),
        "b2": jnp.zeros((1, d0 // 4), jnp.float32),
        "w3": xavier(keys[6], (d0 // 4, d0 // 8)),
        "b3": jnp.zeros((1, d0 // 8), jnp.float32),
        # predict layer (kaiming-style uniform), stored transposed (2F, 1); bias zero.
        "wp": jax.random.uniform(keys[7], (2 * f, 1), jnp.float32,
                                 -jnp.sqrt(3.0 / (2 * f)), jnp.sqrt(3.0 / (2 * f))),
        "bp": jnp.zeros((1, 1), jnp.float32),
    }
    return params


if __name__ == "__main__":
    # Small shapes consistent with the forward pass; batch chosen to exercise
    # multi-tile grid + padding.
    user_num, item_num = 50, 40
    factor_num, num_layers = 16, 3
    batch = 300

    key = jax.random.PRNGKey(0)
    kp, ku, ki = jax.random.split(key, 3)
    params = init_params(kp, user_num, item_num, factor_num, num_layers)

    user = jax.random.randint(ku, (batch,), 0, user_num + 1, dtype=jnp.int32)
    item = jax.random.randint(ki, (batch,), 0, item_num, dtype=jnp.int32)

    ref = ncf_rec_reference(user, item, params)

    # all-f32 path (embeddings + MXU): tight correctness check, 2-tile grid + padding.
    out_f32 = ncf_rec_forward(user, item, params, block_batch=256,
                              embed_dtype=jnp.float32, mxu_dtype=jnp.float32)
    out_f32 = jax.block_until_ready(out_f32)
    assert out_f32.shape == (batch,)
    assert jnp.allclose(out_f32, ref, atol=1e-4, rtol=1e-3), (
        float(jnp.max(jnp.abs(out_f32 - ref))))

    # bf16 embeddings + bf16 MXU (v6e/v7x fast path; f32 accumulate + f32 VPU): loose check.
    out_bf16 = ncf_rec_forward(user, item, params, block_batch=128,
                               embed_dtype=jnp.bfloat16, mxu_dtype=jnp.bfloat16)
    out_bf16 = jax.block_until_ready(out_bf16)
    assert out_bf16.shape == (batch,)
    assert jnp.allclose(out_bf16, ref, atol=5e-3, rtol=1e-1), (
        float(jnp.max(jnp.abs(out_bf16 - ref))))

    # flag==0 / flag==2 trust path (GraphAttentionLayer, trust_data.get_slice,
    # compute_scores) is not implemented: GraphAttentionLayer is not defined in
    # the provided module and get_slice is host-side data access.
    print("KERNEL_OK")
</pallas_src>

<mosaic_0001>
module attributes {stable_mosaic.version = 11 : i64} {
  func.func @ncf_rec_kernel(%arg0: i32, %arg1: memref<256x80xf32, #tpu.memory_space<vmem>>, %arg2: memref<256x80xf32, #tpu.memory_space<vmem>>, %arg3: memref<64x64xf32, #tpu.memory_space<vmem>>, %arg4: memref<64x64xf32, #tpu.memory_space<vmem>>, %arg5: memref<1x64xf32, #tpu.memory_space<vmem>>, %arg6: memref<64x32xf32, #tpu.memory_space<vmem>>, %arg7: memref<1x32xf32, #tpu.memory_space<vmem>>, %arg8: memref<32x16xf32, #tpu.memory_space<vmem>>, %arg9: memref<1x16xf32, #tpu.memory_space<vmem>>, %arg10: memref<2x16xf32, #tpu.memory_space<vmem>>, %arg11: memref<1x256xf32, #tpu.memory_space<vmem>>) attributes {dimension_semantics = [#tpu.dimension_semantics<parallel>], iteration_bounds = array<i64: 2>, scalar_prefetch = 0 : i64, scratch_operands = 0 : i64, tpu.core_type = #tpu.core_type<tc>, window_params = [{transform_indices = @transform_0, window_bounds = array<i64: 256, 80>}, {transform_indices = @transform_1, window_bounds = array<i64: 256, 80>}, {pipeline_mode = #tpu.pipeline_mode<synchronous>, transform_indices = @transform_2, window_bounds = array<i64: 64, 64>}, {pipeline_mode = #tpu.pipeline_mode<synchronous>, transform_indices = @transform_3, window_bounds = array<i64: 64, 64>}, {pipeline_mode = #tpu.pipeline_mode<synchronous>, transform_indices = @transform_4, window_bounds = array<i64: 1, 64>}, {pipeline_mode = #tpu.pipeline_mode<synchronous>, transform_indices = @transform_5, window_bounds = array<i64: 64, 32>}, {pipeline_mode = #tpu.pipeline_mode<synchronous>, transform_indices = @transform_6, window_bounds = array<i64: 1, 32>}, {pipeline_mode = #tpu.pipeline_mode<synchronous>, transform_indices = @transform_7, window_bounds = array<i64: 32, 16>}, {pipeline_mode = #tpu.pipeline_mode<synchronous>, transform_indices = @transform_8, window_bounds = array<i64: 1, 16>}, {pipeline_mode = #tpu.pipeline_mode<synchronous>, transform_indices = @transform_9, window_bounds = array<i64: 2, 16>}, {transform_indices = @transform_10, window_bounds = array<i64: 1, 256>}]} {
    %c0 = arith.constant 0 : index
    %c0_0 = arith.constant 0 : index
    %0 = vector.load %arg1[%c0, %c0_0] : memref<256x80xf32, #tpu.memory_space<vmem>>, vector<256x80xf32>
    %c0_1 = arith.constant 0 : index
    %c0_2 = arith.constant 0 : index
    %1 = vector.load %arg2[%c0_1, %c0_2] : memref<256x80xf32, #tpu.memory_space<vmem>>, vector<256x80xf32>
    %2 = vector.extract_strided_slice %0 {offsets = [0, 64], sizes = [256, 16], strides = [1, 1]} : vector<256x80xf32> to vector<256x16xf32>
    %3 = vector.extract_strided_slice %1 {offsets = [0, 64], sizes = [256, 16], strides = [1, 1]} : vector<256x80xf32> to vector<256x16xf32>
    %4 = arith.mulf %2, %3 : vector<256x16xf32>
    %5 = vector.extract_strided_slice %0 {offsets = [0, 0], sizes = [256, 64], strides = [1, 1]} : vector<256x80xf32> to vector<256x64xf32>
    %c0_3 = arith.constant 0 : index
    %c0_4 = arith.constant 0 : index
    %6 = vector.load %arg3[%c0_3, %c0_4] : memref<64x64xf32, #tpu.memory_space<vmem>>, vector<64x64xf32>
    %cst = arith.constant dense<0.000000e+00> : vector<256x64xf32>
    %7 = tpu.matmul %5, %6, %cst {dimension_numbers = #tpu.dot_dimension_numbers<[1], [0], [0], [1], [0, 0, 1, 1], [], []>} : vector<256x64xf32>, vector<64x64xf32>, vector<256x64xf32> -> vector<256x64xf32>
    %8 = vector.extract_strided_slice %1 {offsets = [0, 0], sizes = [256, 64], strides = [1, 1]} : vector<256x80xf32> to vector<256x64xf32>
    %c0_5 = arith.constant 0 : index
    %c0_6 = arith.constant 0 : index
    %9 = vector.load %arg4[%c0_5, %c0_6] : memref<64x64xf32, #tpu.memory_space<vmem>>, vector<64x64xf32>
    %cst_7 = arith.constant dense<0.000000e+00> : vector<256x64xf32>
    %10 = tpu.matmul %8, %9, %cst_7 {dimension_numbers = #tpu.dot_dimension_numbers<[1], [0], [0], [1], [0, 0, 1, 1], [], []>} : vector<256x64xf32>, vector<64x64xf32>, vector<256x64xf32> -> vector<256x64xf32>
    %11 = arith.addf %7, %10 : vector<256x64xf32>
    %c0_8 = arith.constant 0 : index
    %c0_9 = arith.constant 0 : index
    %12 = vector.load %arg5[%c0_8, %c0_9] : memref<1x64xf32, #tpu.memory_space<vmem>>, vector<1x64xf32>
    %13 = vector.broadcast %12 : vector<1x64xf32> to vector<256x64xf32>
    %14 = arith.addf %11, %13 : vector<256x64xf32>
    %cst_10 = arith.constant 0.000000e+00 : f32
    %15 = vector.broadcast %cst_10 : f32 to vector<256x64xf32>
    %16 = arith.maximumf %14, %15 : vector<256x64xf32>
    %c0_11 = arith.constant 0 : index
    %c0_12 = arith.constant 0 : index
    %17 = vector.load %arg6[%c0_11, %c0_12] : memref<64x32xf32, #tpu.memory_space<vmem>>, vector<64x32xf32>
    %cst_13 = arith.constant dense<0.000000e+00> : vector<256x32xf32>
    %18 = tpu.matmul %16, %17, %cst_13 {dimension_numbers = #tpu.dot_dimension_numbers<[1], [0], [0], [1], [0, 0, 1, 1], [], []>} : vector<256x64xf32>, vector<64x32xf32>, vector<256x32xf32> -> vector<256x32xf32>
    %c0_14 = arith.constant 0 : index
    %c0_15 = arith.constant 0 : index
    %19 = vector.load %arg7[%c0_14, %c0_15] : memref<1x32xf32, #tpu.memory_space<vmem>>, vector<1x32xf32>
    %20 = vector.broadcast %19 : vector<1x32xf32> to vector<256x32xf32>
    %21 = arith.addf %18, %20 : vector<256x32xf32>
    %cst_16 = arith.constant 0.000000e+00 : f32
    %22 = vector.broadcast %cst_16 : f32 to vector<256x32xf32>
    %23 = arith.maximumf %21, %22 : vector<256x32xf32>
    %c0_17 = arith.constant 0 : index
    %c0_18 = arith.constant 0 : index
    %24 = vector.load %arg8[%c0_17, %c0_18] : memref<32x16xf32, #tpu.memory_space<vmem>>, vector<32x16xf32>
    %cst_19 = arith.constant dense<0.000000e+00> : vector<256x16xf32>
    %25 = tpu.matmul %23, %24, %cst_19 {dimension_numbers = #tpu.dot_dimension_numbers<[1], [0], [0], [1], [0, 0, 1, 1], [], []>} : vector<256x32xf32>, vector<32x16xf32>, vector<256x16xf32> -> vector<256x16xf32>
    %c0_20 = arith.constant 0 : index
    %c0_21 = arith.constant 0 : index
    %26 = vector.load %arg9[%c0_20, %c0_21] : memref<1x16xf32, #tpu.memory_space<vmem>>, vector<1x16xf32>
    %27 = vector.broadcast %26 : vector<1x16xf32> to vector<256x16xf32>
    %28 = arith.addf %25, %27 : vector<256x16xf32>
    %cst_22 = arith.constant 0.000000e+00 : f32
    %29 = vector.broadcast %cst_22 : f32 to vector<256x16xf32>
    %30 = arith.maximumf %28, %29 : vector<256x16xf32>
    %c0_23 = arith.constant 0 : index
    %c0_24 = arith.constant 0 : index
    %31 = vector.load %arg10[%c0_23, %c0_24] : memref<2x16xf32, #tpu.memory_space<vmem>>, vector<1x16xf32>
    %32 = vector.broadcast %31 : vector<1x16xf32> to vector<256x16xf32>
    %33 = arith.mulf %4, %32 : vector<256x16xf32>
    %c1 = arith.constant 1 : index
    %c0_25 = arith.constant 0 : index
    %34 = vector.load %arg10[%c1, %c0_25] : memref<2x16xf32, #tpu.memory_space<vmem>>, vector<1x16xf32>
    %35 = vector.broadcast %34 : vector<1x16xf32> to vector<256x16xf32>
    %36 = arith.mulf %30, %35 : vector<256x16xf32>
    %37 = arith.addf %33, %36 : vector<256x16xf32>
    %cst_26 = arith.constant dense<0.000000e+00> : vector<256xf32>
    %38 = vector.multi_reduction <add>, %37, %cst_26 [1] : vector<256x16xf32> to vector<256xf32>
    %39 = vector.shape_cast %38 : vector<256xf32> to vector<1x256xf32>
    %c0_27 = arith.constant 0 : index
    %c0_28 = arith.constant 0 : index
    %40 = vector.load %arg11[%c0_27, %c0_28] : memref<1x256xf32, #tpu.memory_space<vmem>>, vector<1x256xf32>
    tpu.vector_store %arg11[%c0_27, %c0_28], %39 {strides = array<i32>} : memref<1x256xf32, #tpu.memory_space<vmem>>, vector<1x256xf32>,
    return
  }
  func.func @transform_0(%arg0: i32) -> (i32, i32) {
    %c0_i32 = arith.constant 0 : i32
    %c0_i32_0 = arith.constant 0 : i32
    return %arg0, %c0_i32 : i32, i32
  }
  func.func @transform_1(%arg0: i32) -> (i32, i32) {
    %c0_i32 = arith.constant 0 : i32
    %c0_i32_0 = arith.constant 0 : i32
    return %arg0, %c0_i32 : i32, i32
  }
  func.func @transform_2(%arg0: i32) -> (i32, i32) {
    %c0_i32 = arith.constant 0 : i32
    %c0_i32_0 = arith.constant 0 : i32
    %c0_i32_1 = arith.constant 0 : i32
    return %c0_i32, %c0_i32_0 : i32, i32
  }
  func.func @transform_3(%arg0: i32) -> (i32, i32) {
    %c0_i32 = arith.constant 0 : i32
    %c0_i32_0 = arith.constant 0 : i32
    %c0_i32_1 = arith.constant 0 : i32
    return %c0_i32, %c0_i32_0 : i32, i32
  }
  func.func @transform_4(%arg0: i32) -> (i32, i32) {
    %c0_i32 = arith.constant 0 : i32
    %c0_i32_0 = arith.constant 0 : i32
    %c0_i32_1 = arith.constant 0 : i32
    return %c0_i32, %c0_i32_0 : i32, i32
  }
  func.func @transform_5(%arg0: i32) -> (i32, i32) {
    %c0_i32 = arith.constant 0 : i32
    %c0_i32_0 = arith.constant 0 : i32
    %c0_i32_1 = arith.constant 0 : i32
    return %c0_i32, %c0_i32_0 : i32, i32
  }
  func.func @transform_6(%arg0: i32) -> (i32, i32) {
    %c0_i32 = arith.constant 0 : i32
    %c0_i32_0 = arith.constant 0 : i32
    %c0_i32_1 = arith.constant 0 : i32
    return %c0_i32, %c0_i32_0 : i32, i32
  }
  func.func @transform_7(%arg0: i32) -> (i32, i32) {
    %c0_i32 = arith.constant 0 : i32
    %c0_i32_0 = arith.constant 0 : i32
    %c0_i32_1 = arith.constant 0 : i32
    return %c0_i32, %c0_i32_0 : i32, i32
  }
  func.func @transform_8(%arg0: i32) -> (i32, i32) {
    %c0_i32 = arith.constant 0 : i32
    %c0_i32_0 = arith.constant 0 : i32
    %c0_i32_1 = arith.constant 0 : i32
    return %c0_i32, %c0_i32_0 : i32, i32
  }
  func.func @transform_9(%arg0: i32) -> (i32, i32) {
    %c0_i32 = arith.constant 0 : i32
    %c0_i32_0 = arith.constant 0 : i32
    %c0_i32_1 = arith.constant 0 : i32
    return %c0_i32, %c0_i32_0 : i32, i32
  }
  func.func @transform_10(%arg0: i32) -> (i32, i32) {
    %c0_i32 = arith.constant 0 : i32
    %c0_i32_0 = arith.constant 0 : i32
    return %c0_i32, %arg0 : i32, i32
  }
}

</mosaic_0001>

<llo_original>
// kernel: tpu_custom_call.1
$region0: #{tpu_custom_call.1}
  #allocation0 [shape = 'u32[]', space=smem, size = 0x4, offset = 0x4, fixed_abs, tag = 'smem constant byte address 0x4 - core index']
  #allocation1 [shape = 'u32[72,128]{1,0:T(1,128)}', space=vmem, size = 0x9000, scoped, tag = 'internal scratch']
  %s0 = inlined_call_operand.vmem [shape: f32[512,80], index: 0, kind: input, shape index: {}]
  %s1 = inlined_call_operand.vmem [shape: f32[512,80], index: 1, kind: input, shape index: {}]
  %s2 = inlined_call_operand.vmem [shape: f32[64,64], index: 2, kind: input, shape index: {}]
  %s3 = inlined_call_operand.vmem [shape: f32[64,64], index: 3, kind: input, shape index: {}]
  %s4 = inlined_call_operand.vmem [shape: f32[1,64], index: 4, kind: input, shape index: {}]
  %s5 = inlined_call_operand.vmem [shape: f32[64,32], index: 5, kind: input, shape index: {}]
  %s6 = inlined_call_operand.vmem [shape: f32[1,32], index: 6, kind: input, shape index: {}]
  %s7 = inlined_call_operand.vmem [shape: f32[32,16], index: 7, kind: input, shape index: {}]
  %s8 = inlined_call_operand.vmem [shape: f32[1,16], index: 8, kind: input, shape index: {}]
  %s9 = inlined_call_operand.vmem [shape: f32[2,16], index: 9, kind: input, shape index: {}]
  %s10 = inlined_call_operand.hbm [shape: f32[1,512], index: 10, kind: output, shape index: {}]
  %s11 = sld [smem:[#allocation0]]
  $region73: #{tpu_custom_call.1} parent=0
    _
  %s13 = ssub.s32 1, %s11
  %s14 = scalar_select 0, %s13, %s11
  $region1: #{tpu_custom_call.1} parent=0
    #allocation2 [shape = 'u8[2048]{0}', space=vmem, size = 0x800, scoped, tag = 'output window, operand 0']
    #allocation3 [shape = 's32[2]{0}', space=sflag, size = 0x8, scoped, tag = 'scoped memory for tpu_custom_call.1']
    %15 = vsyncpa [#allocation3], 0
    %s16 = scalar_lea.sflag [#allocation3], 1
    %17 = vsyncpa %s16, 0
    loop: start=0, step=1, limit=4
    $region2: #{tpu_custom_call.1} parent=1 // loop_pre_header
      _
    $region3: #{tpu_custom_call.1} parent=1 // loop_header
      %s19 = sphi 0, %s23
      %p20 = scmp.ge.s32.totalorder %s19, 4
      %s29 = sphi 0, %s31
      %s32 = sphi 0, %s29
      %s33 = sphi 0, %s32
      %s49 = sphi 0, %s33
      %s55 = sphi 0, %s57
      %s58 = sphi 0, %s55
      %s59 = sphi 0, %s58
      %s75 = sphi 0, %s59
      %s79 = sphi 0, %s79
      %s81 = sphi 0, %s79
      %s82 = sphi 0, %s81
      %s96 = sphi 0, %s82
      %s100 = sphi 0, %s100
      %s102 = sphi 0, %s100
      %s103 = sphi 0, %s102
      %s117 = sphi 0, %s103
      %s121 = sphi 0, %s121
      %s123 = sphi 0, %s121
      %s124 = sphi 0, %s123
      %s138 = sphi 0, %s124
      %s142 = sphi 0, %s142
      %s144 = sphi 0, %s142
      %s145 = sphi 0, %s144
      %s159 = sphi 0, %s145
      %s163 = sphi 0, %s163
      %s165 = sphi 0, %s163
      %s166 = sphi 0, %s165
      %s180 = sphi 0, %s166
      %s184 = sphi 0, %s184
      %s186 = sphi 0, %s184
      %s187 = sphi 0, %s186
      %s201 = sphi 0, %s187
      %s205 = sphi 0, %s205
      %s207 = sphi 0, %s205
      %s208 = sphi 0, %s207
      %s222 = sphi 0, %s208
      %s226 = sphi 0, %s226
      %s228 = sphi 0, %s226
      %s229 = sphi 0, %s228
      %s243 = sphi 0, %s229
      %s249 = sphi 0, %s251
      %s252 = sphi 0, %s249
      %s253 = sphi 0, %s252
      %s269 = sphi 0, %s253
    $region4: #{tpu_custom_call.1} parent=1 // loop_header_branch
      %22 = sbr.rel (%p20) target = $region8
    $region5: #{tpu_custom_call.1} parent=1 // loop_body
      %s24 = ssub.s32 %s19, 1
      %s25 = ssub.s32 %s19, 2
      %s26 = sadd.s32 %s19, 1
      %s27 = ssub.s32 %s19, %s26
      %p28 = scmp.eq.s32.totalorder %s27, 0
      %s30 = sadd.s32 %s29, 1
      %s31 = scalar_select %p28, %s29, %s30
      %p34 = pneg %p28
      %p35 = scmp.eq.s32.totalorder %s19, 1
      %p36 = por %p34, %p35
      %p37 = scmp.ne.s32.totalorder %s29, %s32
      %p38 = scmp.eq.s32.totalorder %s19, 0
      %p39 = por %p37, %p38
      %p40 = scmp.ne.s32.totalorder %s29, %s32
      %p41 = scmp.eq.s32.totalorder %s24, 1
      %p42 = por %p40, %p41
      %p43 = scmp.ne.s32.totalorder %s32, %s33
      %p44 = scmp.eq.s32.totalorder %s24, 0
      %p45 = por %p43, %p44
      %p46 = scmp.ne.s32.totalorder %s32, %s33
      %p47 = scmp.eq.s32.totalorder %s25, 1
      %p48 = por %p46, %p47
      %p50 = scmp.ne.s32.totalorder %s33, %s49
      %p51 = scmp.eq.s32.totalorder %s25, 0
      %p52 = por %p50, %p51
      %s53 = ssub.s32 %s19, %s26
      %p54 = scmp.eq.s32.totalorder %s53, 0
      %s56 = sadd.s32 %s55, 1
      %s57 = scalar_select %p54, %s55, %s56
      %p60 = pneg %p54
      %p61 = scmp.eq.s32.totalorder %s19, 1
      %p62 = por %p60, %p61
      %p63 = scmp.ne.s32.totalorder %s55, %s58
      %p64 = scmp.eq.s32.totalorder %s19, 0
      %p65 = por %p63, %p64
      %p66 = scmp.ne.s32.totalorder %s55, %s58
      %p67 = scmp.eq.s32.totalorder %s24, 1
      %p68 = por %p66, %p67
      %p69 = scmp.ne.s32.totalorder %s58, %s59
      %p70 = scmp.eq.s32.totalorder %s24, 0
      %p71 = por %p69, %p70
      %p72 = scmp.ne.s32.totalorder %s58, %s59
      %p73 = scmp.eq.s32.totalorder %s25, 1
      %p74 = por %p72, %p73
      %p76 = scmp.ne.s32.totalorder %s59, %s75
      %p77 = scmp.eq.s32.totalorder %s25, 0
      %p78 = por %p76, %p77
      %s80 = sadd.s32 %s79, 1
      %p83 = scmp.eq.s32.totalorder %s19, 1
      %p84 = scmp.ne.s32.totalorder %s79, %s81
      %p85 = scmp.eq.s32.totalorder %s19, 0
      %p86 = por %p84, %p85
      %p87 = scmp.ne.s32.totalorder %s79, %s81
      %p88 = scmp.eq.s32.totalorder %s24, 1
      %p89 = por %p87, %p88
      %p90 = scmp.ne.s32.totalorder %s81, %s82
      %p91 = scmp.eq.s32.totalorder %s24, 0
      %p92 = por %p90, %p91
      %p93 = scmp.ne.s32.totalorder %s81, %s82
      %p94 = scmp.eq.s32.totalorder %s25, 1
      %p95 = por %p93, %p94
      %p97 = scmp.ne.s32.totalorder %s82, %s96
      %p98 = scmp.eq.s32.totalorder %s25, 0
      %p99 = por %p97, %p98
      %s101 = sadd.s32 %s100, 1
      %p104 = scmp.eq.s32.totalorder %s19, 1
      %p105 = scmp.ne.s32.totalorder %s100, %s102
      %p106 = scmp.eq.s32.totalorder %s19, 0
      %p107 = por %p105, %p106
      %p108 = scmp.ne.s32.totalorder %s100, %s102
      %p109 = scmp.eq.s32.totalorder %s24, 1
      %p110 = por %p108, %p109
      %p111 = scmp.ne.s32.totalorder %s102, %s103
      %p112 = scmp.eq.s32.totalorder %s24, 0
      %p113 = por %p111, %p112
      %p114 = scmp.ne.s32.totalorder %s102, %s103
      %p115 = scmp.eq.s32.totalorder %s25, 1
      %p116 = por %p114, %p115
      %p118 = scmp.ne.s32.totalorder %s103, %s117
      %p119 = scmp.eq.s32.totalorder %s25, 0
      %p120 = por %p118, %p119
      %s122 = sadd.s32 %s121, 1
      %p125 = scmp.eq.s32.totalorder %s19, 1
      %p126 = scmp.ne.s32.totalorder %s121, %s123
      %p127 = scmp.eq.s32.totalorder %s19, 0
      %p128 = por %p126, %p127
      %p129 = scmp.ne.s32.totalorder %s121, %s123
      %p130 = scmp.eq.s32.totalorder %s24, 1
      %p131 = por %p129, %p130
      %p132 = scmp.ne.s32.totalorder %s123, %s124
      %p133 = scmp.eq.s32.totalorder %s24, 0
      %p134 = por %p132, %p133
      %p135 = scmp.ne.s32.totalorder %s123, %s124
      %p136 = scmp.eq.s32.totalorder %s25, 1
      %p137 = por %p135, %p136
      %p139 = scmp.ne.s32.totalorder %s124, %s138
      %p140 = scmp.eq.s32.totalorder %s25, 0
      %p141 = por %p139, %p140
      %s143 = sadd.s32 %s142, 1
      %p146 = scmp.eq.s32.totalorder %s19, 1
      %p147 = scmp.ne.s32.totalorder %s142, %s144
      %p148 = scmp.eq.s32.totalorder %s19, 0
      %p149 = por %p147, %p148
      %p150 = scmp.ne.s32.totalorder %s142, %s144
      %p151 = scmp.eq.s32.totalorder %s24, 1
      %p152 = por %p150, %p151
      %p153 = scmp.ne.s32.totalorder %s144, %s145
      %p154 = scmp.eq.s32.totalorder %s24, 0
      %p155 = por %p153, %p154
      %p156 = scmp.ne.s32.totalorder %s144, %s145
      %p157 = scmp.eq.s32.totalorder %s25, 1
      %p158 = por %p156, %p157
      %p160 = scmp.ne.s32.totalorder %s145, %s159
      %p161 = scmp.eq.s32.totalorder %s25, 0
      %p162 = por %p160, %p161
      %s164 = sadd.s32 %s163, 1
      %p167 = scmp.eq.s32.totalorder %s19, 1
      %p168 = scmp.ne.s32.totalorder %s163, %s165
      %p169 = scmp.eq.s32.totalorder %s19, 0
      %p170 = por %p168, %p169
      %p171 = scmp.ne.s32.totalorder %s163, %s165
      %p172 = scmp.eq.s32.totalorder %s24, 1
      %p173 = por %p171, %p172
      %p174 = scmp.ne.s32.totalorder %s165, %s166
      %p175 = scmp.eq.s32.totalorder %s24, 0
      %p176 = por %p174, %p175
      %p177 = scmp.ne.s32.totalorder %s165, %s166
      %p178 = scmp.eq.s32.totalorder %s25, 1
      %p179 = por %p177, %p178
      %p181 = scmp.ne.s32.totalorder %s166, %s180
      %p182 = scmp.eq.s32.totalorder %s25, 0
      %p183 = por %p181, %p182
      %s185 = sadd.s32 %s184, 1
      %p188 = scmp.eq.s32.totalorder %s19, 1
      %p189 = scmp.ne.s32.totalorder %s184, %s186
      %p190 = scmp.eq.s32.totalorder %s19, 0
      %p191 = por %p189, %p190
      %p192 = scmp.ne.s32.totalorder %s184, %s186
      %p193 = scmp.eq.s32.totalorder %s24, 1
      %p194 = por %p192, %p193
      %p195 = scmp.ne.s32.totalorder %s186, %s187
      %p196 = scmp.eq.s32.totalorder %s24, 0
      %p197 = por %p195, %p196
      %p198 = scmp.ne.s32.totalorder %s186, %s187
      %p199 = scmp.eq.s32.totalorder %s25, 1
      %p200 = por %p198, %p199
      %p202 = scmp.ne.s32.totalorder %s187, %s201
      %p203 = scmp.eq.s32.totalorder %s25, 0
      %p204 = por %p202, %p203
      %s206 = sadd.s32 %s205, 1
      %p209 = scmp.eq.s32.totalorder %s19, 1
      %p210 = scmp.ne.s32.totalorder %s205, %s207
      %p211 = scmp.eq.s32.totalorder %s19, 0
      %p212 = por %p210, %p211
      %p213 = scmp.ne.s32.totalorder %s205, %s207
      %p214 = scmp.eq.s32.totalorder %s24, 1
      %p215 = por %p213, %p214
      %p216 = scmp.ne.s32.totalorder %s207, %s208
      %p217 = scmp.eq.s32.totalorder %s24, 0
      %p218 = por %p216, %p217
      %p219 = scmp.ne.s32.totalorder %s207, %s208
      %p220 = scmp.eq.s32.totalorder %s25, 1
      %p221 = por %p219, %p220
      %p223 = scmp.ne.s32.totalorder %s208, %s222
      %p224 = scmp.eq.s32.totalorder %s25, 0
      %p225 = por %p223, %p224
      %s227 = sadd.s32 %s226, 1
      %p230 = scmp.eq.s32.totalorder %s19, 1
      %p231 = scmp.ne.s32.totalorder %s226, %s228
      %p232 = scmp.eq.s32.totalorder %s19, 0
      %p233 = por %p231, %p232
      %p234 = scmp.ne.s32.totalorder %s226, %s228
      %p235 = scmp.eq.s32.totalorder %s24, 1
      %p236 = por %p234, %p235
      %p237 = scmp.ne.s32.totalorder %s228, %s229
      %p238 = scmp.eq.s32.totalorder %s24, 0
      %p239 = por %p237, %p238
      %p240 = scmp.ne.s32.totalorder %s228, %s229
      %p241 = scmp.eq.s32.totalorder %s25, 1
      %p242 = por %p240, %p241
      %p244 = scmp.ne.s32.totalorder %s229, %s243
      %p245 = scmp.eq.s32.totalorder %s25, 0
      %p246 = por %p244, %p245
      %s247 = ssub.s32 %s19, %s26
      %p248 = scmp.eq.s32.totalorder %s247, 0
      %s250 = sadd.s32 %s249, 1
      %s251 = scalar_select %p248, %s249, %s250
      %p254 = pneg %p248
      %p255 = scmp.eq.s32.totalorder %s19, 1
      %p256 = por %p254, %p255
      %p257 = scmp.ne.s32.totalorder %s249, %s252
      %p258 = scmp.eq.s32.totalorder %s19, 0
      %p259 = por %p257, %p258
      %p260 = scmp.ne.s32.totalorder %s249, %s252
      %p261 = scmp.eq.s32.totalorder %s24, 1
      %p262 = por %p260, %p261
      %p263 = scmp.ne.s32.totalorder %s252, %s253
      %p264 = scmp.eq.s32.totalorder %s24, 0
      %p265 = por %p263, %p264
      %p266 = scmp.ne.s32.totalorder %s252, %s253
      %p267 = scmp.eq.s32.totalorder %s25, 1
      %p268 = por %p266, %p267
      %p270 = scmp.ne.s32.totalorder %s253, %s269
      %p271 = scmp.eq.s32.totalorder %s25, 0
      %p272 = por %p270, %p271
      %p273 = scmp.le.s32.totalorder 1, %s19
      %p274 = scmp.lt.s32.totalorder %s19, 3
      %p275 = pnand %p273, %p274
      %p276 = pneg %p275
      // Predicated region
      $region9: #{tpu_custom_call.1} parent=5 // pred_check
        _
      $region10: #{tpu_custom_call.1} parent=5 // pred_check_branch
        %278 = sbr.rel (%p275) target = $region12
      $region11: #{tpu_custom_call.1} parent=5 // pred_region
        %s279 = ssub.s32 %s19, 1
        // Predicated region
        $region13: #{tpu_custom_call.1} parent=11 // pred_check
          %p280 = pneg %p92
        $region14: #{tpu_custom_call.1} parent=11 // pred_check_branch
          %282 = sbr.rel (%p280) target = $region16
        $region15: #{tpu_custom_call.1} parent=11 // pred_region
          _
        $region16: #{tpu_custom_call.1} parent=11 // pred_fallthru
          _
        // Predicated region
        $region17: #{tpu_custom_call.1} parent=11 // pred_check
          %p283 = pneg %p113
        $region18: #{tpu_custom_call.1} parent=11 // pred_check_branch
          %285 = sbr.rel (%p283) target = $region20
        $region19: #{tpu_custom_call.1} parent=11 // pred_region
          _
        $region20: #{tpu_custom_call.1} parent=11 // pred_fallthru
          _
        // Predicated region
        $region21: #{tpu_custom_call.1} parent=11 // pred_check
          %p286 = pneg %p134
        $region22: #{tpu_custom_call.1} parent=11 // pred_check_branch
          %288 = sbr.rel (%p286) target = $region24
        $region23: #{tpu_custom_call.1} parent=11 // pred_region
          _
        $region24: #{tpu_custom_call.1} parent=11 // pred_fallthru
          _
        // Predicated region
        $region25: #{tpu_custom_call.1} parent=11 // pred_check
          %p289 = pneg %p155
        $region26: #{tpu_custom_call.1} parent=11 // pred_check_branch
          %291 = sbr.rel (%p289) target = $region28
        $region27: #{tpu_custom_call.1} parent=11 // pred_region
          _
        $region28: #{tpu_custom_call.1} parent=11 // pred_fallthru
          _
        // Predicated region
        $region29: #{tpu_custom_call.1} parent=11 // pred_check
          %p292 = pneg %p176
        $region30: #{tpu_custom_call.1} parent=11 // pred_check_branch
          %294 = sbr.rel (%p292) target = $region32
        $region31: #{tpu_custom_call.1} parent=11 // pred_region
          _
        $region32: #{tpu_custom_call.1} parent=11 // pred_fallthru
          _
        // Predicated region
        $region33: #{tpu_custom_call.1} parent=11 // pred_check
          %p295 = pneg %p197
        $region34: #{tpu_custom_call.1} parent=11 // pred_check_branch
          %297 = sbr.rel (%p295) target = $region36
        $region35: #{tpu_custom_call.1} parent=11 // pred_region
          _
        $region36: #{tpu_custom_call.1} parent=11 // pred_fallthru
          _
        // Predicated region
        $region37: #{tpu_custom_call.1} parent=11 // pred_check
          %p298 = pneg %p218
        $region38: #{tpu_custom_call.1} parent=11 // pred_check_branch
          %300 = sbr.rel (%p298) target = $region40
        $region39: #{tpu_custom_call.1} parent=11 // pred_region
          _
        $region40: #{tpu_custom_call.1} parent=11 // pred_fallthru
          _
        // Predicated region
        $region41: #{tpu_custom_call.1} parent=11 // pred_check
          %p301 = pneg %p239
        $region42: #{tpu_custom_call.1} parent=11 // pred_check_branch
          %303 = sbr.rel (%p301) target = $region44
        $region43: #{tpu_custom_call.1} parent=11 // pred_region
          _
        $region44: #{tpu_custom_call.1} parent=11 // pred_fallthru
          _
      $region12: #{tpu_custom_call.1} parent=5 // pred_fallthru
        _
      %p304 = scmp.lt.s32.totalorder %s19, 2
      // Predicated region
      $region45: #{tpu_custom_call.1} parent=5 // pred_check
        %p305 = pneg %p304
      $region46: #{tpu_custom_call.1} parent=5 // pred_check_branch
        %307 = sbr.rel (%p305) target = $region48
      $region47: #{tpu_custom_call.1} parent=5 // pred_region
        // Predicated region
        $region49: #{tpu_custom_call.1} parent=47 // pred_check
          %p308 = pneg %p39
        $region50: #{tpu_custom_call.1} parent=47 // pred_check_branch
          %310 = sbr.rel (%p308) target = $region52
        $region51: #{tpu_custom_call.1} parent=47 // pred_region
          %s311 = smul.u32 32, %s19
          %p312 = scmp.lt.s32.totalorder %s311, 63
          %s313 = scalar_select %p312, %s311, 63
          %s314 = smul.addr %s313, 8
          %s315 = scalar_lea.vmem %s0, %s314
          %s316 = smul.u32 32, %s19
        $region52: #{tpu_custom_call.1} parent=47 // pred_fallthru
          _
        // Predicated region
        $region53: #{tpu_custom_call.1} parent=47 // pred_check
          %p317 = pneg %p65
        $region54: #{tpu_custom_call.1} parent=47 // pred_check_branch
          %319 = sbr.rel (%p317) target = $region56
        $region55: #{tpu_custom_call.1} parent=47 // pred_region
          %s320 = smul.u32 32, %s19
          %p321 = scmp.lt.s32.totalorder %s320, 63
          %s322 = scalar_select %p321, %s320, 63
          %s323 = smul.addr %s322, 8
          %s324 = scalar_lea.vmem %s1, %s323
          %s325 = smul.u32 32, %s19
        $region56: #{tpu_custom_call.1} parent=47 // pred_fallthru
          _
      $region48: #{tpu_custom_call.1} parent=5 // pred_fallthru
        _
      %p326 = scmp.le.s32.totalorder 1, %s19
      %p327 = scmp.lt.s32.totalorder %s19, 3
      %p328 = pnand %p326, %p327
      %p329 = pneg %p328
      // Predicated region
      $region57: #{tpu_custom_call.1} parent=5 // pred_check
        _
      $region58: #{tpu_custom_call.1} parent=5 // pred_check_branch
        %331 = sbr.rel (%p328) target = $region60
      $region59: #{tpu_custom_call.1} parent=5 // pred_region
        %s332 = ssub.s32 %s19, 1
        %s333 = smul.u32 32, %s24
        %p334 = scmp.lt.s32.totalorder %s333, 63
        %s335 = scalar_select %p334, %s333, 63
        %s336 = smul.addr %s335, 8
        %s337 = scalar_lea.vmem %s0, %s336
        %p338 = pneg %p45
        %p339 = pneg %p42
        %s340 = smul.u32 32, %s24
        %p341 = scmp.lt.s32.totalorder %s340, 63
        %s342 = scalar_select %p341, %s340, 63
        %s343 = smul.addr %s342, 8
        %s344 = scalar_lea.vmem %s1, %s343
        %p345 = pneg %p71
        %p346 = pneg %p68
        %p347 = pneg %p92
        %p348 = pneg %p89
        %p349 = pneg %p113
        %p350 = pneg %p110
        %p351 = pneg %p134
        %p352 = pneg %p131
        %p353 = pneg %p155
        %p354 = pneg %p152
        %p355 = pneg %p176
        %p356 = pneg %p173
        %p357 = pneg %p197
        %p358 = pneg %p194
        %p359 = pneg %p218
        %p360 = pneg %p215
        %p361 = pneg %p239
        %p362 = pneg %p236
        %p363 = pneg %p265
        %p364 = pneg %p262
        %s365 = sand.u32 %s252, 1
        %s366 = scalar_lea.sflag [#allocation3], %s365
        %s367 = sand.u32 %s252, 1
        %s368 = smul.addr %s367, 2
        %s369 = scalar_lea.vmem [#allocation2], %s368
        %s370 = smul.u32 32, %s24
        %p371 = scmp.lt.s32.totalorder %s370, 63
        %s372 = scalar_select %p371, %s370, 63
        %s373 = smul.addr %s372, 8
        %s374 = scalar_lea.vmem %s0, %s373
        %s375 = smul.u32 32, %s24
        %s376 = smul.u32 32, %s24
        %p377 = scmp.lt.s32.totalorder %s376, 63
        %s378 = scalar_select %p377, %s376, 63
        %s379 = smul.addr %s378, 8
        %s380 = scalar_lea.vmem %s1, %s379
        %s381 = smul.u32 32, %s24
        %s382 = smul.u32 2, %s24
        %v383 = vld [vmem:[%s374] sm:$0xff]
        %v384 = vld [vmem:[%s374 + $0x8] sm:$0xff]
        %v385 = vld [vmem:[%s374 + $0x10] sm:$0xff]
        %v386 = vld [vmem:[%s374 + $0x18] sm:$0xff]
        %v387 = vld [vmem:[%s374 + $0x20] sm:$0xff]
        %v388 = vld [vmem:[%s374 + $0x28] sm:$0xff]
        %v389 = vld [vmem:[%s374 + $0x30] sm:$0xff]
        %v390 = vld [vmem:[%s374 + $0x38] sm:$0xff]
        %v391 = vld [vmem:[%s374 + $0x40] sm:$0xff]
        %v392 = vld [vmem:[%s374 + $0x48] sm:$0xff]
        %v393 = vld [vmem:[%s374 + $0x50] sm:$0xff]
        %v394 = vld [vmem:[%s374 + $0x58] sm:$0xff]
        %v395 = vld [vmem:[%s374 + $0x60] sm:$0xff]
        %v396 = vld [vmem:[%s374 + $0x68] sm:$0xff]
        %v397 = vld [vmem:[%s374 + $0x70] sm:$0xff]
        %v398 = vld [vmem:[%s374 + $0x78] sm:$0xff]
        %v399 = vld [vmem:[%s374 + $0x80] sm:$0xff]
        %v400 = vld [vmem:[%s374 + $0x88] sm:$0xff]
        %v401 = vld [vmem:[%s374 + $0x90] sm:$0xff]
        %v402 = vld [vmem:[%s374 + $0x98] sm:$0xff]
        %v403 = vld [vmem:[%s374 + $0xa0] sm:$0xff]
        %v404 = vld [vmem:[%s374 + $0xa8] sm:$0xff]
        %v405 = vld [vmem:[%s374 + $0xb0] sm:$0xff]
        %v406 = vld [vmem:[%s374 + $0xb8] sm:$0xff]
        %v407 = vld [vmem:[%s374 + $0xc0] sm:$0xff]
        %v408 = vld [vmem:[%s374 + $0xc8] sm:$0xff]
        %v409 = vld [vmem:[%s374 + $0xd0] sm:$0xff]
        %v410 = vld [vmem:[%s374 + $0xd8] sm:$0xff]
        %v411 = vld [vmem:[%s374 + $0xe0] sm:$0xff]
        %v412 = vld [vmem:[%s374 + $0xe8] sm:$0xff]
        %v413 = vld [vmem:[%s374 + $0xf0] sm:$0xff]
        %v414 = vld [vmem:[%s374 + $0xf8] sm:$0xff]
        %v415 = vld [vmem:[%s380] sm:$0xff]
        %v416 = vld [vmem:[%s380 + $0x8] sm:$0xff]
        %v417 = vld [vmem:[%s380 + $0x10] sm:$0xff]
        %v418 = vld [vmem:[%s380 + $0x18] sm:$0xff]
        %v419 = vld [vmem:[%s380 + $0x20] sm:$0xff]
        %v420 = vld [vmem:[%s380 + $0x28] sm:$0xff]
        %v421 = vld [vmem:[%s380 + $0x30] sm:$0xff]
        %v422 = vld [vmem:[%s380 + $0x38] sm:$0xff]
        %v423 = vld [vmem:[%s380 + $0x40] sm:$0xff]
        %v424 = vld [vmem:[%s380 + $0x48] sm:$0xff]
        %v425 = vld [vmem:[%s380 + $0x50] sm:$0xff]
        %v426 = vld [vmem:[%s380 + $0x58] sm:$0xff]
        %v427 = vld [vmem:[%s380 + $0x60] sm:$0xff]
        %v428 = vld [vmem:[%s380 + $0x68] sm:$0xff]
        %v429 = vld [vmem:[%s380 + $0x70] sm:$0xff]
        %v430 = vld [vmem:[%s380 + $0x78] sm:$0xff]
        %v431 = vld [vmem:[%s380 + $0x80] sm:$0xff]
        %v432 = vld [vmem:[%s380 + $0x88] sm:$0xff]
        %v433 = vld [vmem:[%s380 + $0x90] sm:$0xff]
        %v434 = vld [vmem:[%s380 + $0x98] sm:$0xff]
        %v435 = vld [vmem:[%s380 + $0xa0] sm:$0xff]
        %v436 = vld [vmem:[%s380 + $0xa8] sm:$0xff]
        %v437 = vld [vmem:[%s380 + $0xb0] sm:$0xff]
        %v438 = vld [vmem:[%s380 + $0xb8] sm:$0xff]
        %v439 = vld [vmem:[%s380 + $0xc0] sm:$0xff]
        %v440 = vld [vmem:[%s380 + $0xc8] sm:$0xff]
        %v441 = vld [vmem:[%s380 + $0xd0] sm:$0xff]
        %v442 = vld [vmem:[%s380 + $0xd8] sm:$0xff]
        %v443 = vld [vmem:[%s380 + $0xe0] sm:$0xff]
        %v444 = vld [vmem:[%s380 + $0xe8] sm:$0xff]
        %v445 = vld [vmem:[%s380 + $0xf0] sm:$0xff]
        %v446 = vld [vmem:[%s380 + $0xf8] sm:$0xff]
        %v447 = vmul.f32 %v383, %v415
        %v448 = vmul.f32 %v384, %v416
        %v449 = vmul.f32 %v385, %v417
        %v450 = vmul.f32 %v386, %v418
        %v451 = vmul.f32 %v387, %v419
        %v452 = vmul.f32 %v388, %v420
        %v453 = vmul.f32 %v389, %v421
        %v454 = vmul.f32 %v390, %v422
        %v455 = vmul.f32 %v391, %v423
        %v456 = vmul.f32 %v392, %v424
        %v457 = vmul.f32 %v393, %v425
        %v458 = vmul.f32 %v394, %v426
        %v459 = vmul.f32 %v395, %v427
        %v460 = vmul.f32 %v396, %v428
        %v461 = vmul.f32 %v397, %v429
        %v462 = vmul.f32 %v398, %v430
        %v463 = vmul.f32 %v399, %v431
        %v464 = vmul.f32 %v400, %v432
        %v465 = vmul.f32 %v401, %v433
        %v466 = vmul.f32 %v402, %v434
        %v467 = vmul.f32 %v403, %v435
        %v468 = vmul.f32 %v404, %v436
        %v469 = vmul.f32 %v405, %v437
        %v470 = vmul.f32 %v406, %v438
        %v471 = vmul.f32 %v407, %v439
        %v472 = vmul.f32 %v408, %v440
        %v473 = vmul.f32 %v409, %v441
        %v474 = vmul.f32 %v410, %v442
        %v475 = vmul.f32 %v411, %v443
        %v476 = vmul.f32 %v412, %v444
        %v477 = vmul.f32 %v413, %v445
        %v478 = vmul.f32 %v414, %v446
        %v479 = vld [vmem:[%s2] sm:$0xff]
        %v480 = vld [vmem:[%s2 + $0x8] sm:$0xff]
        %v481 = vld [vmem:[%s2 + $0x10] sm:$0xff]
        %v482 = vld [vmem:[%s2 + $0x18] sm:$0xff]
        %v483 = vld [vmem:[%s2 + $0x20] sm:$0xff]
        %v484 = vld [vmem:[%s2 + $0x28] sm:$0xff]
        %v485 = vld [vmem:[%s2 + $0x30] sm:$0xff]
        %v486 = vld [vmem:[%s2 + $0x38] sm:$0xff]
        %v487 = vld [vmem:[%s3] sm:$0xff]
        %v488 = vld [vmem:[%s3 + $0x8] sm:$0xff]
        %v489 = vld [vmem:[%s3 + $0x10] sm:$0xff]
        %v490 = vld [vmem:[%s3 + $0x18] sm:$0xff]
        %v491 = vld [vmem:[%s3 + $0x20] sm:$0xff]
        %v492 = vld [vmem:[%s3 + $0x28] sm:$0xff]
        %v493 = vld [vmem:[%s3 + $0x30] sm:$0xff]
        %v494 = vld [vmem:[%s3 + $0x38] sm:$0xff]
        %vm495 = vcmask 523264
        %v497 = vsel %vm495, %v415, 0
        %v500 = vsel %vm495, %v416, 0
        %v503 = vsel %vm495, %v417, 0
        %v506 = vsel %vm495, %v418, 0
        %v509 = vsel %vm495, %v419, 0
        %v512 = vsel %vm495, %v420, 0
        %v515 = vsel %vm495, %v421, 0
        %v518 = vsel %vm495, %v422, 0
        %v521 = vsel %vm495, %v423, 0
        %v524 = vsel %vm495, %v424, 0
        %v527 = vsel %vm495, %v425, 0
        %v530 = vsel %vm495, %v426, 0
        %v533 = vsel %vm495, %v427, 0
        %v536 = vsel %vm495, %v428, 0
        %v539 = vsel %vm495, %v429, 0
        %v542 = vsel %vm495, %v430, 0
        %v545 = vsel %vm495, %v431, 0
        %v548 = vsel %vm495, %v432, 0
        %v551 = vsel %vm495, %v433, 0
        %v554 = vsel %vm495, %v434, 0
        %v557 = vsel %vm495, %v435, 0
        %v560 = vsel %vm495, %v436, 0
        %v563 = vsel %vm495, %v437, 0
        %v566 = vsel %vm495, %v438, 0
        %v569 = vsel %vm495, %v439, 0
        %v572 = vsel %vm495, %v440, 0
        %v575 = vsel %vm495, %v441, 0
        %v578 = vsel %vm495, %v442, 0
        %v581 = vsel %vm495, %v443, 0
        %v584 = vsel %vm495, %v444, 0
        %v587 = vsel %vm495, %v445, 0
        %v590 = vsel %vm495, %v446, 0
        %592 = vmatpush.msra.mxu0 0.0
        %593 = vmatpush.msra.mxu0 0.0
        %594 = vmatpush.msra.mxu0 0.0
        %595 = vmatpush.msra.mxu0 0.0
        %596 = vmatpush.msra.mxu0 0.0
        %597 = vmatpush.msra.mxu0 0.0
        %598 = vmatpush.msra.mxu0 0.0
        %599 = vmatpush.msra.mxu0 0.0
        %600 = vmatpush.msra.mxu0 %v494
        %601 = vmatpush.msra.mxu0 %v493
        %602 = vmatpush.msra.mxu0 %v492
        %603 = vmatpush.msra.mxu0 %v491
        %604 = vmatpush.msra.mxu0 %v490
        %605 = vmatpush.msra.mxu0 %v489
        %606 = vmatpush.msra.mxu0 %v488
        %607 = vmatpush.msra.mxu0 %v487
        %608 = vmatmul.f32.gmra.mxu0 %v497
        %v609 = vpop.f32.mrf.mxu0
        %v610 = vadd.f32 0.0, %v609
        %611 = vmatmul.f32.gmra.mxu0 %v500
        %v612 = vpop.f32.mrf.mxu0
        %v613 = vadd.f32 0.0, %v612
        %614 = vmatmul.f32.gmra.mxu0 %v503
        %v615 = vpop.f32.mrf.mxu0
        %v616 = vadd.f32 0.0, %v615
        %617 = vmatmul.f32.gmra.mxu0 %v506
        %v618 = vpop.f32.mrf.mxu0
        %v619 = vadd.f32 0.0, %v618
        %620 = vmatmul.f32.gmra.mxu0 %v509
        %v621 = vpop.f32.mrf.mxu0
        %v622 = vadd.f32 0.0, %v621
        %623 = vmatmul.f32.gmra.mxu0 %v512
        %v624 = vpop.f32.mrf.mxu0
        %v625 = vadd.f32 0.0, %v624
        %626 = vmatmul.f32.gmra.mxu0 %v515
        %v627 = vpop.f32.mrf.mxu0
        %v628 = vadd.f32 0.0, %v627
        %629 = vmatmul.f32.gmra.mxu0 %v518
        %v630 = vpop.f32.mrf.mxu0
        %v631 = vadd.f32 0.0, %v630
        %632 = vmatmul.f32.gmra.mxu0 %v521
        %v633 = vpop.f32.mrf.mxu0
        %v634 = vadd.f32 0.0, %v633
        %635 = vmatmul.f32.gmra.mxu0 %v524
        %v636 = vpop.f32.mrf.mxu0
        %v637 = vadd.f32 0.0, %v636
        %638 = vmatmul.f32.gmra.mxu0 %v527
        %v639 = vpop.f32.mrf.mxu0
        %v640 = vadd.f32 0.0, %v639
        %641 = vmatmul.f32.gmra.mxu0 %v530
        %v642 = vpop.f32.mrf.mxu0
        %v643 = vadd.f32 0.0, %v642
        %644 = vmatmul.f32.gmra.mxu0 %v533
        %v645 = vpop.f32.mrf.mxu0
        %v646 = vadd.f32 0.0, %v645
        %647 = vmatmul.f32.gmra.mxu0 %v536
        %v648 = vpop.f32.mrf.mxu0
        %v649 = vadd.f32 0.0, %v648
        %650 = vmatmul.f32.gmra.mxu0 %v539
        %v651 = vpop.f32.mrf.mxu0
        %v652 = vadd.f32 0.0, %v651
        %653 = vmatmul.f32.gmra.mxu0 %v542
        %v654 = vpop.f32.mrf.mxu0
        %v655 = vadd.f32 0.0, %v654
        %656 = vmatmul.f32.gmra.mxu0 %v545
        %v657 = vpop.f32.mrf.mxu0
        %v658 = vadd.f32 0.0, %v657
        %659 = vmatmul.f32.gmra.mxu0 %v548
        %v660 = vpop.f32.mrf.mxu0
        %v661 = vadd.f32 0.0, %v660
        %662 = vmatmul.f32.gmra.mxu0 %v551
        %v663 = vpop.f32.mrf.mxu0
        %v664 = vadd.f32 0.0, %v663
        %665 = vmatmul.f32.gmra.mxu0 %v554
        %v666 = vpop.f32.mrf.mxu0
        %v667 = vadd.f32 0.0, %v666
        %668 = vmatmul.f32.gmra.mxu0 %v557
        %v669 = vpop.f32.mrf.mxu0
        %v670 = vadd.f32 0.0, %v669
        %671 = vmatmul.f32.gmra.mxu0 %v560
        %v672 = vpop.f32.mrf.mxu0
        %v673 = vadd.f32 0.0, %v672
        %674 = vmatmul.f32.gmra.mxu0 %v563
        %v675 = vpop.f32.mrf.mxu0
        %v676 = vadd.f32 0.0, %v675
        %677 = vmatmul.f32.gmra.mxu0 %v566
        %v678 = vpop.f32.mrf.mxu0
        %v679 = vadd.f32 0.0, %v678
        %680 = vmatmul.f32.gmra.mxu0 %v569
        %v681 = vpop.f32.mrf.mxu0
        %v682 = vadd.f32 0.0, %v681
        %683 = vmatmul.f32.gmra.mxu0 %v572
        %v684 = vpop.f32.mrf.mxu0
        %v685 = vadd.f32 0.0, %v684
        %686 = vmatmul.f32.gmra.mxu0 %v575
        %v687 = vpop.f32.mrf.mxu0
        %v688 = vadd.f32 0.0, %v687
        %689 = vmatmul.f32.gmra.mxu0 %v578
        %v690 = vpop.f32.mrf.mxu0
        %v691 = vadd.f32 0.0, %v690
        %692 = vmatmul.f32.gmra.mxu0 %v581
        %v693 = vpop.f32.mrf.mxu0
        %v694 = vadd.f32 0.0, %v693
        %695 = vmatmul.f32.gmra.mxu0 %v584
        %v696 = vpop.f32.mrf.mxu0
        %v697 = vadd.f32 0.0, %v696
        %698 = vmatmul.f32.gmra.mxu0 %v587
        %v699 = vpop.f32.mrf.mxu0
        %v700 = vadd.f32 0.0, %v699
        %701 = vmatmul.f32.gmra.mxu0 %v590
        %v702 = vpop.f32.mrf.mxu0
        %v703 = vadd.f32 0.0, %v702
        %704 = vdwg.mxu0
        %v706 = vsel %vm495, %v383, 0
        %v709 = vsel %vm495, %v384, 0
        %v712 = vsel %vm495, %v385, 0
        %v715 = vsel %vm495, %v386, 0
        %v718 = vsel %vm495, %v387, 0
        %v721 = vsel %vm495, %v388, 0
        %v724 = vsel %vm495, %v389, 0
        %v727 = vsel %vm495, %v390, 0
        %v730 = vsel %vm495, %v391, 0
        %v733 = vsel %vm495, %v392, 0
        %v736 = vsel %vm495, %v393, 0
        %v739 = vsel %vm495, %v394, 0
        %v742 = vsel %vm495, %v395, 0
        %v745 = vsel %vm495, %v396, 0
        %v748 = vsel %vm495, %v397, 0
        %v751 = vsel %vm495, %v398, 0
        %v754 = vsel %vm495, %v399, 0
        %v757 = vsel %vm495, %v400, 0
        %v760 = vsel %vm495, %v401, 0
        %v763 = vsel %vm495, %v402, 0
        %v766 = vsel %vm495, %v403, 0
        %v769 = vsel %vm495, %v404, 0
        %v772 = vsel %vm495, %v405, 0
        %v775 = vsel %vm495, %v406, 0
        %v778 = vsel %vm495, %v407, 0
        %v781 = vsel %vm495, %v408, 0
        %v784 = vsel %vm495, %v409, 0
        %v787 = vsel %vm495, %v410, 0
        %v790 = vsel %vm495, %v411, 0
        %v793 = vsel %vm495, %v412, 0
        %v796 = vsel %vm495, %v413, 0
        %v799 = vsel %vm495, %v414, 0
        %801 = vmatpush.msra.mxu0 0.0
        %802 = vmatpush.msra.mxu0 0.0
        %803 = vmatpush.msra.mxu0 0.0
        %804 = vmatpush.msra.mxu0 0.0
        %805 = vmatpush.msra.mxu0 0.0
        %806 = vmatpush.msra.mxu0 0.0
        %807 = vmatpush.msra.mxu0 0.0
        %808 = vmatpush.msra.mxu0 0.0
        %809 = vmatpush.msra.mxu0 %v486
        %810 = vmatpush.msra.mxu0 %v485
        %811 = vmatpush.msra.mxu0 %v484
        %812 = vmatpush.msra.mxu0 %v483
        %813 = vmatpush.msra.mxu0 %v482
        %814 = vmatpush.msra.mxu0 %v481
        %815 = vmatpush.msra.mxu0 %v480
        %816 = vmatpush.msra.mxu0 %v479
        %817 = vmatmul.f32.gmra.mxu0 %v706
        %v818 = vpop.f32.mrf.mxu0
        %v819 = vadd.f32 %v610, %v818
        %820 = vmatmul.f32.gmra.mxu0 %v709
        %v821 = vpop.f32.mrf.mxu0
        %v822 = vadd.f32 %v613, %v821
        %823 = vmatmul.f32.gmra.mxu0 %v712
        %v824 = vpop.f32.mrf.mxu0
        %v825 = vadd.f32 %v616, %v824
        %826 = vmatmul.f32.gmra.mxu0 %v715
        %v827 = vpop.f32.mrf.mxu0
        %v828 = vadd.f32 %v619, %v827
        %829 = vmatmul.f32.gmra.mxu0 %v718
        %v830 = vpop.f32.mrf.mxu0
        %v831 = vadd.f32 %v622, %v830
        %832 = vmatmul.f32.gmra.mxu0 %v721
        %v833 = vpop.f32.mrf.mxu0
        %v834 = vadd.f32 %v625, %v833
        %835 = vmatmul.f32.gmra.mxu0 %v724
        %v836 = vpop.f32.mrf.mxu0
        %v837 = vadd.f32 %v628, %v836
        %838 = vmatmul.f32.gmra.mxu0 %v727
        %v839 = vpop.f32.mrf.mxu0
        %v840 = vadd.f32 %v631, %v839
        %841 = vmatmul.f32.gmra.mxu0 %v730
        %v842 = vpop.f32.mrf.mxu0
        %v843 = vadd.f32 %v634, %v842
        %844 = vmatmul.f32.gmra.mxu0 %v733
        %v845 = vpop.f32.mrf.mxu0
        %v846 = vadd.f32 %v637, %v845
        %847 = vmatmul.f32.gmra.mxu0 %v736
        %v848 = vpop.f32.mrf.mxu0
        %v849 = vadd.f32 %v640, %v848
        %850 = vmatmul.f32.gmra.mxu0 %v739
        %v851 = vpop.f32.mrf.mxu0
        %v852 = vadd.f32 %v643, %v851
        %853 = vmatmul.f32.gmra.mxu0 %v742
        %v854 = vpop.f32.mrf.mxu0
        %v855 = vadd.f32 %v646, %v854
        %856 = vmatmul.f32.gmra.mxu0 %v745
        %v857 = vpop.f32.mrf.mxu0
        %v858 = vadd.f32 %v649, %v857
        %859 = vmatmul.f32.gmra.mxu0 %v748
        %v860 = vpop.f32.mrf.mxu0
        %v861 = vadd.f32 %v652, %v860
        %862 = vmatmul.f32.gmra.mxu0 %v751
        %v863 = vpop.f32.mrf.mxu0
        %v864 = vadd.f32 %v655, %v863
        %865 = vmatmul.f32.gmra.mxu0 %v754
        %v866 = vpop.f32.mrf.mxu0
        %v867 = vadd.f32 %v658, %v866
        %868 = vmatmul.f32.gmra.mxu0 %v757
        %v869 = vpop.f32.mrf.mxu0
        %v870 = vadd.f32 %v661, %v869
        %871 = vmatmul.f32.gmra.mxu0 %v760
        %v872 = vpop.f32.mrf.mxu0
        %v873 = vadd.f32 %v664, %v872
        %874 = vmatmul.f32.gmra.mxu0 %v763
        %v875 = vpop.f32.mrf.mxu0
        %v876 = vadd.f32 %v667, %v875
        %877 = vmatmul.f32.gmra.mxu0 %v766
        %v878 = vpop.f32.mrf.mxu0
        %v879 = vadd.f32 %v670, %v878
        %880 = vmatmul.f32.gmra.mxu0 %v769
        %v881 = vpop.f32.mrf.mxu0
        %v882 = vadd.f32 %v673, %v881
        %883 = vmatmul.f32.gmra.mxu0 %v772
        %v884 = vpop.f32.mrf.mxu0
        %v885 = vadd.f32 %v676, %v884
        %886 = vmatmul.f32.gmra.mxu0 %v775
        %v887 = vpop.f32.mrf.mxu0
        %v888 = vadd.f32 %v679, %v887
        %889 = vmatmul.f32.gmra.mxu0 %v778
        %v890 = vpop.f32.mrf.mxu0
        %v891 = vadd.f32 %v682, %v890
        %892 = vmatmul.f32.gmra.mxu0 %v781
        %v893 = vpop.f32.mrf.mxu0
        %v894 = vadd.f32 %v685, %v893
        %895 = vmatmul.f32.gmra.mxu0 %v784
        %v896 = vpop.f32.mrf.mxu0
        %v897 = vadd.f32 %v688, %v896
        %898 = vmatmul.f32.gmra.mxu0 %v787
        %v899 = vpop.f32.mrf.mxu0
        %v900 = vadd.f32 %v691, %v899
        %901 = vmatmul.f32.gmra.mxu0 %v790
        %v902 = vpop.f32.mrf.mxu0
        %v903 = vadd.f32 %v694, %v902
        %904 = vmatmul.f32.gmra.mxu0 %v793
        %v905 = vpop.f32.mrf.mxu0
        %v906 = vadd.f32 %v697, %v905
        %907 = vmatmul.f32.gmra.mxu0 %v796
        %v908 = vpop.f32.mrf.mxu0
        %v909 = vadd.f32 %v700, %v908
        %910 = vmatmul.f32.gmra.mxu0 %v799
        %v911 = vpop.f32.mrf.mxu0
        %v912 = vadd.f32 %v703, %v911
        %913 = vdwg.mxu0
        %v914 = vld [vmem:[%s4] sm:$0x1]
        %v916 = vperm.slane %v914, 0
        %v918 = vadd.f32 %v819, %v916
        %v919 = vadd.f32 %v822, %v916
        %v920 = vadd.f32 %v825, %v916
        %v921 = vadd.f32 %v828, %v916
        %v922 = vadd.f32 %v831, %v916
        %v923 = vadd.f32 %v834, %v916
        %v924 = vadd.f32 %v837, %v916
        %v925 = vadd.f32 %v840, %v916
        %v926 = vadd.f32 %v843, %v916
        %v927 = vadd.f32 %v846, %v916
        %v928 = vadd.f32 %v849, %v916
        %v929 = vadd.f32 %v852, %v916
        %v930 = vadd.f32 %v855, %v916
        %v931 = vadd.f32 %v858, %v916
        %v932 = vadd.f32 %v861, %v916
        %v933 = vadd.f32 %v864, %v916
        %v934 = vadd.f32 %v867, %v916
        %v935 = vadd.f32 %v870, %v916
        %v936 = vadd.f32 %v873, %v916
        %v937 = vadd.f32 %v876, %v916
        %v938 = vadd.f32 %v879, %v916
        %v939 = vadd.f32 %v882, %v916
        %v940 = vadd.f32 %v885, %v916
        %v941 = vadd.f32 %v888, %v916
        %v942 = vadd.f32 %v891, %v916
        %v943 = vadd.f32 %v894, %v916
        %v944 = vadd.f32 %v897, %v916
        %v945 = vadd.f32 %v900, %v916
        %v946 = vadd.f32 %v903, %v916
        %v947 = vadd.f32 %v906, %v916
        %v948 = vadd.f32 %v909, %v916
        %v949 = vadd.f32 %v912, %v916
        %v950 = vmax.f32 %v918, 0.0
        %v951 = vmax.f32 %v919, 0.0
        %v952 = vmax.f32 %v920, 0.0
        %v953 = vmax.f32 %v921, 0.0
        %v954 = vmax.f32 %v922, 0.0
        %v955 = vmax.f32 %v923, 0.0
        %v956 = vmax.f32 %v924, 0.0
        %v957 = vmax.f32 %v925, 0.0
        %v958 = vmax.f32 %v926, 0.0
        %v959 = vmax.f32 %v927, 0.0
        %v960 = vmax.f32 %v928, 0.0
        %v961 = vmax.f32 %v929, 0.0
        %v962 = vmax.f32 %v930, 0.0
        %v963 = vmax.f32 %v931, 0.0
        %v964 = vmax.f32 %v932, 0.0
        %v965 = vmax.f32 %v933, 0.0
        %v966 = vmax.f32 %v934, 0.0
        %v967 = vmax.f32 %v935, 0.0
        %v968 = vmax.f32 %v936, 0.0
        %v969 = vmax.f32 %v937, 0.0
        %v970 = vmax.f32 %v938, 0.0
        %v971 = vmax.f32 %v939, 0.0
        %v972 = vmax.f32 %v940, 0.0
        %v973 = vmax.f32 %v941, 0.0
        %v974 = vmax.f32 %v942, 0.0
        %v975 = vmax.f32 %v943, 0.0
        %v976 = vmax.f32 %v944, 0.0
        %v977 = vmax.f32 %v945, 0.0
        %v978 = vmax.f32 %v946, 0.0
        %v979 = vmax.f32 %v947, 0.0
        %v980 = vmax.f32 %v948, 0.0
        %v981 = vmax.f32 %v949, 0.0
        %v982 = vld [vmem:[%s5] sm:$0xff]
        %v983 = vld [vmem:[%s5 + $0x8] sm:$0xff]
        %v984 = vld [vmem:[%s5 + $0x10] sm:$0xff]
        %v985 = vld [vmem:[%s5 + $0x18] sm:$0xff]
        %v986 = vld [vmem:[%s5 + $0x20] sm:$0xff]
        %v987 = vld [vmem:[%s5 + $0x28] sm:$0xff]
        %v988 = vld [vmem:[%s5 + $0x30] sm:$0xff]
        %v989 = vld [vmem:[%s5 + $0x38] sm:$0xff]
        %v990 = vld [vmem:[%s6] sm:$0x1]
        %v992 = vperm.slane %v990, 0
        %v995 = vsel %vm495, %v950, 0
        %v998 = vsel %vm495, %v951, 0
        %v1001 = vsel %vm495, %v952, 0
        %v1004 = vsel %vm495, %v953, 0
        %v1007 = vsel %vm495, %v954, 0
        %v1010 = vsel %vm495, %v955, 0
        %v1013 = vsel %vm495, %v956, 0
        %v1016 = vsel %vm495, %v957, 0
        %v1019 = vsel %vm495, %v958, 0
        %v1022 = vsel %vm495, %v959, 0
        %v1025 = vsel %vm495, %v960, 0
        %v1028 = vsel %vm495, %v961, 0
        %v1031 = vsel %vm495, %v962, 0
        %v1034 = vsel %vm495, %v963, 0
        %v1037 = vsel %vm495, %v964, 0
        %v1040 = vsel %vm495, %v965, 0
        %v1043 = vsel %vm495, %v966, 0
        %v1046 = vsel %vm495, %v967, 0
        %v1049 = vsel %vm495, %v968, 0
        %v1052 = vsel %vm495, %v969, 0
        %v1055 = vsel %vm495, %v970, 0
        %v1058 = vsel %vm495, %v971, 0
        %v1061 = vsel %vm495, %v972, 0
        %v1064 = vsel %vm495, %v973, 0
        %v1067 = vsel %vm495, %v974, 0
        %v1070 = vsel %vm495, %v975, 0
        %v1073 = vsel %vm495, %v976, 0
        %v1076 = vsel %vm495, %v977, 0
        %v1079 = vsel %vm495, %v978, 0
        %v1082 = vsel %vm495, %v979, 0
        %v1085 = vsel %vm495, %v980, 0
        %v1088 = vsel %vm495, %v981, 0
        %1090 = vmatpush.msra.mxu0 0.0
        %1091 = vmatpush.msra.mxu0 0.0
        %1092 = vmatpush.msra.mxu0 0.0
        %1093 = vmatpush.msra.mxu0 0.0
        %1094 = vmatpush.msra.mxu0 0.0
        %1095 = vmatpush.msra.mxu0 0.0
        %1096 = vmatpush.msra.mxu0 0.0
        %1097 = vmatpush.msra.mxu0 0.0
        %1098 = vmatpush.msra.mxu0 %v989
        %1099 = vmatpush.msra.mxu0 %v988
        %1100 = vmatpush.msra.mxu0 %v987
        %1101 = vmatpush.msra.mxu0 %v986
        %1102 = vmatpush.msra.mxu0 %v985
        %1103 = vmatpush.msra.mxu0 %v984
        %1104 = vmatpush.msra.mxu0 %v983
        %1105 = vmatpush.msra.mxu0 %v982
        %1106 = vmatmul.f32.gmra.mxu0 %v995
        %v1107 = vpop.f32.mrf.mxu0
        %v1108 = vadd.f32 %v992, %v1107
        %1109 = vmatmul.f32.gmra.mxu0 %v998
        %v1110 = vpop.f32.mrf.mxu0
        %v1111 = vadd.f32 %v992, %v1110
        %1112 = vmatmul.f32.gmra.mxu0 %v1001
        %v1113 = vpop.f32.mrf.mxu0
        %v1114 = vadd.f32 %v992, %v1113
        %1115 = vmatmul.f32.gmra.mxu0 %v1004
        %v1116 = vpop.f32.mrf.mxu0
        %v1117 = vadd.f32 %v992, %v1116
        %1118 = vmatmul.f32.gmra.mxu0 %v1007
        %v1119 = vpop.f32.mrf.mxu0
        %v1120 = vadd.f32 %v992, %v1119
        %1121 = vmatmul.f32.gmra.mxu0 %v1010
        %v1122 = vpop.f32.mrf.mxu0
        %v1123 = vadd.f32 %v992, %v1122
        %1124 = vmatmul.f32.gmra.mxu0 %v1013
        %v1125 = vpop.f32.mrf.mxu0
        %v1126 = vadd.f32 %v992, %v1125
        %1127 = vmatmul.f32.gmra.mxu0 %v1016
        %v1128 = vpop.f32.mrf.mxu0
        %v1129 = vadd.f32 %v992, %v1128
        %1130 = vmatmul.f32.gmra.mxu0 %v1019
        %v1131 = vpop.f32.mrf.mxu0
        %v1132 = vadd.f32 %v992, %v1131
        %1133 = vmatmul.f32.gmra.mxu0 %v1022
        %v1134 = vpop.f32.mrf.mxu0
        %v1135 = vadd.f32 %v992, %v1134
        %1136 = vmatmul.f32.gmra.mxu0 %v1025
        %v1137 = vpop.f32.mrf.mxu0
        %v1138 = vadd.f32 %v992, %v1137
        %1139 = vmatmul.f32.gmra.mxu0 %v1028
        %v1140 = vpop.f32.mrf.mxu0
        %v1141 = vadd.f32 %v992, %v1140
        %1142 = vmatmul.f32.gmra.mxu0 %v1031
        %v1143 = vpop.f32.mrf.mxu0
        %v1144 = vadd.f32 %v992, %v1143
        %1145 = vmatmul.f32.gmra.mxu0 %v1034
        %v1146 = vpop.f32.mrf.mxu0
        %v1147 = vadd.f32 %v992, %v1146
        %1148 = vmatmul.f32.gmra.mxu0 %v1037
        %v1149 = vpop.f32.mrf.mxu0
        %v1150 = vadd.f32 %v992, %v1149
        %1151 = vmatmul.f32.gmra.mxu0 %v1040
        %v1152 = vpop.f32.mrf.mxu0
        %v1153 = vadd.f32 %v992, %v1152
        %1154 = vmatmul.f32.gmra.mxu0 %v1043
        %v1155 = vpop.f32.mrf.mxu0
        %v1156 = vadd.f32 %v992, %v1155
        %1157 = vmatmul.f32.gmra.mxu0 %v1046
        %v1158 = vpop.f32.mrf.mxu0
        %v1159 = vadd.f32 %v992, %v1158
        %1160 = vmatmul.f32.gmra.mxu0 %v1049
        %v1161 = vpop.f32.mrf.mxu0
        %v1162 = vadd.f32 %v992, %v1161
        %1163 = vmatmul.f32.gmra.mxu0 %v1052
        %v1164 = vpop.f32.mrf.mxu0
        %v1165 = vadd.f32 %v992, %v1164
        %1166 = vmatmul.f32.gmra.mxu0 %v1055
        %v1167 = vpop.f32.mrf.mxu0
        %v1168 = vadd.f32 %v992, %v1167
        %1169 = vmatmul.f32.gmra.mxu0 %v1058
        %v1170 = vpop.f32.mrf.mxu0
        %v1171 = vadd.f32 %v992, %v1170
        %1172 = vmatmul.f32.gmra.mxu0 %v1061
        %v1173 = vpop.f32.mrf.mxu0
        %v1174 = vadd.f32 %v992, %v1173
        %1175 = vmatmul.f32.gmra.mxu0 %v1064
        %v1176 = vpop.f32.mrf.mxu0
        %v1177 = vadd.f32 %v992, %v1176
        %1178 = vmatmul.f32.gmra.mxu0 %v1067
        %v1179 = vpop.f32.mrf.mxu0
        %v1180 = vadd.f32 %v992, %v1179
        %1181 = vmatmul.f32.gmra.mxu0 %v1070
        %v1182 = vpop.f32.mrf.mxu0
        %v1183 = vadd.f32 %v992, %v1182
        %1184 = vmatmul.f32.gmra.mxu0 %v1073
        %v1185 = vpop.f32.mrf.mxu0
        %v1186 = vadd.f32 %v992, %v1185
        %1187 = vmatmul.f32.gmra.mxu0 %v1076
        %v1188 = vpop.f32.mrf.mxu0
        %v1189 = vadd.f32 %v992, %v1188
        %1190 = vmatmul.f32.gmra.mxu0 %v1079
        %v1191 = vpop.f32.mrf.mxu0
        %v1192 = vadd.f32 %v992, %v1191
        %1193 = vmatmul.f32.gmra.mxu0 %v1082
        %v1194 = vpop.f32.mrf.mxu0
        %v1195 = vadd.f32 %v992, %v1194
        %1196 = vmatmul.f32.gmra.mxu0 %v1085
        %v1197 = vpop.f32.mrf.mxu0
        %v1198 = vadd.f32 %v992, %v1197
        %1199 = vmatmul.f32.gmra.mxu0 %v1088
        %v1200 = vpop.f32.mrf.mxu0
        %v1201 = vadd.f32 %v992, %v1200
        %1202 = vdwg.mxu0
        %v1203 = vmax.f32 %v1108, 0.0
        %v1204 = vmax.f32 %v1111, 0.0
        %v1205 = vmax.f32 %v1114, 0.0
        %v1206 = vmax.f32 %v1117, 0.0
        %v1207 = vmax.f32 %v1120, 0.0
        %v1208 = vmax.f32 %v1123, 0.0
        %v1209 = vmax.f32 %v1126, 0.0
        %v1210 = vmax.f32 %v1129, 0.0
        %v1211 = vmax.f32 %v1132, 0.0
        %v1212 = vmax.f32 %v1135, 0.0
        %v1213 = vmax.f32 %v1138, 0.0
        %v1214 = vmax.f32 %v1141, 0.0
        %v1215 = vmax.f32 %v1144, 0.0
        %v1216 = vmax.f32 %v1147, 0.0
        %v1217 = vmax.f32 %v1150, 0.0
        %v1218 = vmax.f32 %v1153, 0.0
        %v1219 = vmax.f32 %v1156, 0.0
        %v1220 = vmax.f32 %v1159, 0.0
        %v1221 = vmax.f32 %v1162, 0.0
        %v1222 = vmax.f32 %v1165, 0.0
        %v1223 = vmax.f32 %v1168, 0.0
        %v1224 = vmax.f32 %v1171, 0.0
        %v1225 = vmax.f32 %v1174, 0.0
        %v1226 = vmax.f32 %v1177, 0.0
        %v1227 = vmax.f32 %v1180, 0.0
        %v1228 = vmax.f32 %v1183, 0.0
        %v1229 = vmax.f32 %v1186, 0.0
        %v1230 = vmax.f32 %v1189, 0.0
        %v1231 = vmax.f32 %v1192, 0.0
        %v1232 = vmax.f32 %v1195, 0.0
        %v1233 = vmax.f32 %v1198, 0.0
        %v1234 = vmax.f32 %v1201, 0.0
        %v1235 = vld [vmem:[%s7] sm:$0xff]
        %v1236 = vld [vmem:[%s7 + $0x8] sm:$0xff]
        %v1237 = vld [vmem:[%s7 + $0x10] sm:$0xff]
        %v1238 = vld [vmem:[%s7 + $0x18] sm:$0xff]
        %v1239 = vld [vmem:[%s8] sm:$0x1]
        %v1241 = vperm.slane %v1239, 0
        %vm1243 = vcmask 261120
        %v1245 = vsel %vm1243, %v1203, 0
        %v1248 = vsel %vm1243, %v1204, 0
        %v1251 = vsel %vm1243, %v1205, 0
        %v1254 = vsel %vm1243, %v1206, 0
        %v1257 = vsel %vm1243, %v1207, 0
        %v1260 = vsel %vm1243, %v1208, 0
        %v1263 = vsel %vm1243, %v1209, 0
        %v1266 = vsel %vm1243, %v1210, 0
        %v1269 = vsel %vm1243, %v1211, 0
        %v1272 = vsel %vm1243, %v1212, 0
        %v1275 = vsel %vm1243, %v1213, 0
        %v1278 = vsel %vm1243, %v1214, 0
        %v1281 = vsel %vm1243, %v1215, 0
        %v1284 = vsel %vm1243, %v1216, 0
        %v1287 = vsel %vm1243, %v1217, 0
        %v1290 = vsel %vm1243, %v1218, 0
        %v1293 = vsel %vm1243, %v1219, 0
        %v1296 = vsel %vm1243, %v1220, 0
        %v1299 = vsel %vm1243, %v1221, 0
        %v1302 = vsel %vm1243, %v1222, 0
        %v1305 = vsel %vm1243, %v1223, 0
        %v1308 = vsel %vm1243, %v1224, 0
        %v1311 = vsel %vm1243, %v1225, 0
        %v1314 = vsel %vm1243, %v1226, 0
        %v1317 = vsel %vm1243, %v1227, 0
        %v1320 = vsel %vm1243, %v1228, 0
        %v1323 = vsel %vm1243, %v1229, 0
        %v1326 = vsel %vm1243, %v1230, 0
        %v1329 = vsel %vm1243, %v1231, 0
        %v1332 = vsel %vm1243, %v1232, 0
        %v1335 = vsel %vm1243, %v1233, 0
        %v1338 = vsel %vm1243, %v1234, 0
        %1340 = vmatpush.msra.mxu0 0.0
        %1341 = vmatpush.msra.mxu0 0.0
        %1342 = vmatpush.msra.mxu0 0.0
        %1343 = vmatpush.msra.mxu0 0.0
        %1344 = vmatpush.msra.mxu0 0.0
        %1345 = vmatpush.msra.mxu0 0.0
        %1346 = vmatpush.msra.mxu0 0.0
        %1347 = vmatpush.msra.mxu0 0.0
        %1348 = vmatpush.msra.mxu0 0.0
        %1349 = vmatpush.msra.mxu0 0.0
        %1350 = vmatpush.msra.mxu0 0.0
        %1351 = vmatpush.msra.mxu0 0.0
        %1352 = vmatpush.msra.mxu0 %v1238
        %1353 = vmatpush.msra.mxu0 %v1237
        %1354 = vmatpush.msra.mxu0 %v1236
        %1355 = vmatpush.msra.mxu0 %v1235
        %1356 = vmatmul.f32.gmra.mxu0 %v1245
        %v1357 = vpop.f32.mrf.mxu0
        %v1358 = vadd.f32 %v1241, %v1357
        %1359 = vmatmul.f32.gmra.mxu0 %v1248
        %v1360 = vpop.f32.mrf.mxu0
        %v1361 = vadd.f32 %v1241, %v1360
        %1362 = vmatmul.f32.gmra.mxu0 %v1251
        %v1363 = vpop.f32.mrf.mxu0
        %v1364 = vadd.f32 %v1241, %v1363
        %1365 = vmatmul.f32.gmra.mxu0 %v1254
        %v1366 = vpop.f32.mrf.mxu0
        %v1367 = vadd.f32 %v1241, %v1366
        %1368 = vmatmul.f32.gmra.mxu0 %v1257
        %v1369 = vpop.f32.mrf.mxu0
        %v1370 = vadd.f32 %v1241, %v1369
        %1371 = vmatmul.f32.gmra.mxu0 %v1260
        %v1372 = vpop.f32.mrf.mxu0
        %v1373 = vadd.f32 %v1241, %v1372
        %1374 = vmatmul.f32.gmra.mxu0 %v1263
        %v1375 = vpop.f32.mrf.mxu0
        %v1376 = vadd.f32 %v1241, %v1375
        %1377 = vmatmul.f32.gmra.mxu0 %v1266
        %v1378 = vpop.f32.mrf.mxu0
        %v1379 = vadd.f32 %v1241, %v1378
        %1380 = vmatmul.f32.gmra.mxu0 %v1269
        %v1381 = vpop.f32.mrf.mxu0
        %v1382 = vadd.f32 %v1241, %v1381
        %1383 = vmatmul.f32.gmra.mxu0 %v1272
        %v1384 = vpop.f32.mrf.mxu0
        %v1385 = vadd.f32 %v1241, %v1384
        %1386 = vmatmul.f32.gmra.mxu0 %v1275
        %v1387 = vpop.f32.mrf.mxu0
        %v1388 = vadd.f32 %v1241, %v1387
        %1389 = vmatmul.f32.gmra.mxu0 %v1278
        %v1390 = vpop.f32.mrf.mxu0
        %v1391 = vadd.f32 %v1241, %v1390
        %1392 = vmatmul.f32.gmra.mxu0 %v1281
        %v1393 = vpop.f32.mrf.mxu0
        %v1394 = vadd.f32 %v1241, %v1393
        %1395 = vmatmul.f32.gmra.mxu0 %v1284
        %v1396 = vpop.f32.mrf.mxu0
        %v1397 = vadd.f32 %v1241, %v1396
        %1398 = vmatmul.f32.gmra.mxu0 %v1287
        %v1399 = vpop.f32.mrf.mxu0
        %v1400 = vadd.f32 %v1241, %v1399
        %1401 = vmatmul.f32.gmra.mxu0 %v1290
        %v1402 = vpop.f32.mrf.mxu0
        %v1403 = vadd.f32 %v1241, %v1402
        %1404 = vmatmul.f32.gmra.mxu0 %v1293
        %v1405 = vpop.f32.mrf.mxu0
        %v1406 = vadd.f32 %v1241, %v1405
        %1407 = vmatmul.f32.gmra.mxu0 %v1296
        %v1408 = vpop.f32.mrf.mxu0
        %v1409 = vadd.f32 %v1241, %v1408
        %1410 = vmatmul.f32.gmra.mxu0 %v1299
        %v1411 = vpop.f32.mrf.mxu0
        %v1412 = vadd.f32 %v1241, %v1411
        %1413 = vmatmul.f32.gmra.mxu0 %v1302
        %v1414 = vpop.f32.mrf.mxu0
        %v1415 = vadd.f32 %v1241, %v1414
        %1416 = vmatmul.f32.gmra.mxu0 %v1305
        %v1417 = vpop.f32.mrf.mxu0
        %v1418 = vadd.f32 %v1241, %v1417
        %1419 = vmatmul.f32.gmra.mxu0 %v1308
        %v1420 = vpop.f32.mrf.mxu0
        %v1421 = vadd.f32 %v1241, %v1420
        %1422 = vmatmul.f32.gmra.mxu0 %v1311
        %v1423 = vpop.f32.mrf.mxu0
        %v1424 = vadd.f32 %v1241, %v1423
        %1425 = vmatmul.f32.gmra.mxu0 %v1314
        %v1426 = vpop.f32.mrf.mxu0
        %v1427 = vadd.f32 %v1241, %v1426
        %1428 = vmatmul.f32.gmra.mxu0 %v1317
        %v1429 = vpop.f32.mrf.mxu0
        %v1430 = vadd.f32 %v1241, %v1429
        %1431 = vmatmul.f32.gmra.mxu0 %v1320
        %v1432 = vpop.f32.mrf.mxu0
        %v1433 = vadd.f32 %v1241, %v1432
        %1434 = vmatmul.f32.gmra.mxu0 %v1323
        %v1435 = vpop.f32.mrf.mxu0
        %v1436 = vadd.f32 %v1241, %v1435
        %1437 = vmatmul.f32.gmra.mxu0 %v1326
        %v1438 = vpop.f32.mrf.mxu0
        %v1439 = vadd.f32 %v1241, %v1438
        %1440 = vmatmul.f32.gmra.mxu0 %v1329
        %v1441 = vpop.f32.mrf.mxu0
        %v1442 = vadd.f32 %v1241, %v1441
        %1443 = vmatmul.f32.gmra.mxu0 %v1332
        %v1444 = vpop.f32.mrf.mxu0
        %v1445 = vadd.f32 %v1241, %v1444
        %1446 = vmatmul.f32.gmra.mxu0 %v1335
        %v1447 = vpop.f32.mrf.mxu0
        %v1448 = vadd.f32 %v1241, %v1447
        %1449 = vmatmul.f32.gmra.mxu0 %v1338
        %v1450 = vpop.f32.mrf.mxu0
        %v1451 = vadd.f32 %v1241, %v1450
        %1452 = vdwg.mxu0
        %v1453 = vmax.f32 %v1358, 0.0
        %v1454 = vmax.f32 %v1361, 0.0
        %v1455 = vmax.f32 %v1364, 0.0
        %v1456 = vmax.f32 %v1367, 0.0
        %v1457 = vmax.f32 %v1370, 0.0
        %v1458 = vmax.f32 %v1373, 0.0
        %v1459 = vmax.f32 %v1376, 0.0
        %v1460 = vmax.f32 %v1379, 0.0
        %v1461 = vmax.f32 %v1382, 0.0
        %v1462 = vmax.f32 %v1385, 0.0
        %v1463 = vmax.f32 %v1388, 0.0
        %v1464 = vmax.f32 %v1391, 0.0
        %v1465 = vmax.f32 %v1394, 0.0
        %v1466 = vmax.f32 %v1397, 0.0
        %v1467 = vmax.f32 %v1400, 0.0
        %v1468 = vmax.f32 %v1403, 0.0
        %v1469 = vmax.f32 %v1406, 0.0
        %v1470 = vmax.f32 %v1409, 0.0
        %v1471 = vmax.f32 %v1412, 0.0
        %v1472 = vmax.f32 %v1415, 0.0
        %v1473 = vmax.f32 %v1418, 0.0
        %v1474 = vmax.f32 %v1421, 0.0
        %v1475 = vmax.f32 %v1424, 0.0
        %v1476 = vmax.f32 %v1427, 0.0
        %v1477 = vmax.f32 %v1430, 0.0
        %v1478 = vmax.f32 %v1433, 0.0
        %v1479 = vmax.f32 %v1436, 0.0
        %v1480 = vmax.f32 %v1439, 0.0
        %v1481 = vmax.f32 %v1442, 0.0
        %v1482 = vmax.f32 %v1445, 0.0
        %v1483 = vmax.f32 %v1448, 0.0
        %v1484 = vmax.f32 %v1451, 0.0
        %v1485 = vld [vmem:[%s9] sm:$0x1]
        %v1486 = vperm.slane %v1485, 0
        %1488 = vrot.lane.b32.xlu0 %v1486, 64
        %v1489 = vpop.permute.xlu0 %1488
        %v1491 = vmul.f32 %v447, %v1489
        %v1492 = vmul.f32 %v448, %v1489
        %v1493 = vmul.f32 %v449, %v1489
        %v1494 = vmul.f32 %v450, %v1489
        %v1495 = vmul.f32 %v451, %v1489
        %v1496 = vmul.f32 %v452, %v1489
        %v1497 = vmul.f32 %v453, %v1489
        %v1498 = vmul.f32 %v454, %v1489
        %v1499 = vmul.f32 %v455, %v1489
        %v1500 = vmul.f32 %v456, %v1489
        %v1501 = vmul.f32 %v457, %v1489
        %v1502 = vmul.f32 %v458, %v1489
        %v1503 = vmul.f32 %v459, %v1489
        %v1504 = vmul.f32 %v460, %v1489
        %v1505 = vmul.f32 %v461, %v1489
        %v1506 = vmul.f32 %v462, %v1489
        %v1507 = vmul.f32 %v463, %v1489
        %v1508 = vmul.f32 %v464, %v1489
        %v1509 = vmul.f32 %v465, %v1489
        %v1510 = vmul.f32 %v466, %v1489
        %v1511 = vmul.f32 %v467, %v1489
        %v1512 = vmul.f32 %v468, %v1489
        %v1513 = vmul.f32 %v469, %v1489
        %v1514 = vmul.f32 %v470, %v1489
        %v1515 = vmul.f32 %v471, %v1489
        %v1516 = vmul.f32 %v472, %v1489
        %v1517 = vmul.f32 %v473, %v1489
        %v1518 = vmul.f32 %v474, %v1489
        %v1519 = vmul.f32 %v475, %v1489
        %v1520 = vmul.f32 %v476, %v1489
        %v1521 = vmul.f32 %v477, %v1489
        %v1522 = vmul.f32 %v478, %v1489
        %v1523 = vld [vmem:[%s9 + $0x1] sm:$0x1]
        %v1524 = vperm.slane %v1523, 0
        %v1525 = vmul.f32 %v1453, %v1524
        %v1526 = vmul.f32 %v1454, %v1524
        %v1527 = vmul.f32 %v1455, %v1524
        %v1528 = vmul.f32 %v1456, %v1524
        %v1529 = vmul.f32 %v1457, %v1524
        %v1530 = vmul.f32 %v1458, %v1524
        %v1531 = vmul.f32 %v1459, %v1524
        %v1532 = vmul.f32 %v1460, %v1524
        %v1533 = vmul.f32 %v1461, %v1524
        %v1534 = vmul.f32 %v1462, %v1524
        %v1535 = vmul.f32 %v1463, %v1524
        %v1536 = vmul.f32 %v1464, %v1524
        %v1537 = vmul.f32 %v1465, %v1524
        %v1538 = vmul.f32 %v1466, %v1524
        %v1539 = vmul.f32 %v1467, %v1524
        %v1540 = vmul.f32 %v1468, %v1524
        %v1541 = vmul.f32 %v1469, %v1524
        %v1542 = vmul.f32 %v1470, %v1524
        %v1543 = vmul.f32 %v1471, %v1524
        %v1544 = vmul.f32 %v1472, %v1524
        %v1545 = vmul.f32 %v1473, %v1524
        %v1546 = vmul.f32 %v1474, %v1524
        %v1547 = vmul.f32 %v1475, %v1524
        %v1548 = vmul.f32 %v1476, %v1524
        %v1549 = vmul.f32 %v1477, %v1524
        %v1550 = vmul.f32 %v1478, %v1524
        %v1551 = vmul.f32 %v1479, %v1524
        %v1552 = vmul.f32 %v1480, %v1524
        %v1553 = vmul.f32 %v1481, %v1524
        %v1554 = vmul.f32 %v1482, %v1524
        %v1555 = vmul.f32 %v1483, %v1524
        %v1556 = vmul.f32 %v1484, %v1524
        %1589 = vrot.lane.b32.xlu0 %v1525, 64
        %v1590 = vpop.permute.xlu0 %1589
        %1591 = vrot.lane.b32.xlu0 %v1526, 64
        %v1592 = vpop.permute.xlu0 %1591
        %1593 = vrot.lane.b32.xlu0 %v1527, 64
        %v1594 = vpop.permute.xlu0 %1593
        %1595 = vrot.lane.b32.xlu0 %v1528, 64
        %v1596 = vpop.permute.xlu0 %1595
        %1597 = vrot.lane.b32.xlu0 %v1529, 64
        %v1598 = vpop.permute.xlu0 %1597
        %1599 = vrot.lane.b32.xlu0 %v1530, 64
        %v1600 = vpop.permute.xlu0 %1599
        %1601 = vrot.lane.b32.xlu0 %v1531, 64
        %v1602 = vpop.permute.xlu0 %1601
        %1603 = vrot.lane.b32.xlu0 %v1532, 64
        %v1604 = vpop.permute.xlu0 %1603
        %1605 = vrot.lane.b32.xlu0 %v1533, 64
        %v1606 = vpop.permute.xlu0 %1605
        %1607 = vrot.lane.b32.xlu0 %v1534, 64
        %v1608 = vpop.permute.xlu0 %1607
        %1609 = vrot.lane.b32.xlu0 %v1535, 64
        %v1610 = vpop.permute.xlu0 %1609
        %1611 = vrot.lane.b32.xlu0 %v1536, 64
        %v1612 = vpop.permute.xlu0 %1611
        %1613 = vrot.lane.b32.xlu0 %v1537, 64
        %v1614 = vpop.permute.xlu0 %1613
        %1615 = vrot.lane.b32.xlu0 %v1538, 64
        %v1616 = vpop.permute.xlu0 %1615
        %1617 = vrot.lane.b32.xlu0 %v1539, 64
        %v1618 = vpop.permute.xlu0 %1617
        %1619 = vrot.lane.b32.xlu0 %v1540, 64
        %v1620 = vpop.permute.xlu0 %1619
        %1621 = vrot.lane.b32.xlu0 %v1541, 64
        %v1622 = vpop.permute.xlu0 %1621
        %1623 = vrot.lane.b32.xlu0 %v1542, 64
        %v1624 = vpop.permute.xlu0 %1623
        %1625 = vrot.lane.b32.xlu0 %v1543, 64
        %v1626 = vpop.permute.xlu0 %1625
        %1627 = vrot.lane.b32.xlu0 %v1544, 64
        %v1628 = vpop.permute.xlu0 %1627
        %1629 = vrot.lane.b32.xlu0 %v1545, 64
        %v1630 = vpop.permute.xlu0 %1629
        %1631 = vrot.lane.b32.xlu0 %v1546, 64
        %v1632 = vpop.permute.xlu0 %1631
        %1633 = vrot.lane.b32.xlu0 %v1547, 64
        %v1634 = vpop.permute.xlu0 %1633
        %1635 = vrot.lane.b32.xlu0 %v1548, 64
        %v1636 = vpop.permute.xlu0 %1635
        %1637 = vrot.lane.b32.xlu0 %v1549, 64
        %v1638 = vpop.permute.xlu0 %1637
        %1639 = vrot.lane.b32.xlu0 %v1550, 64
        %v1640 = vpop.permute.xlu0 %1639
        %1641 = vrot.lane.b32.xlu0 %v1551, 64
        %v1642 = vpop.permute.xlu0 %1641
        %1643 = vrot.lane.b32.xlu0 %v1552, 64
        %v1644 = vpop.permute.xlu0 %1643
        %1645 = vrot.lane.b32.xlu0 %v1553, 64
        %v1646 = vpop.permute.xlu0 %1645
        %1647 = vrot.lane.b32.xlu0 %v1554, 64
        %v1648 = vpop.permute.xlu0 %1647
        %1649 = vrot.lane.b32.xlu0 %v1555, 64
        %v1650 = vpop.permute.xlu0 %1649
        %1651 = vrot.lane.b32.xlu0 %v1556, 64
        %v1652 = vpop.permute.xlu0 %1651
        %v1685 = vadd.f32 %v1491, %v1590
        %v1686 = vadd.f32 %v1492, %v1592
        %v1687 = vadd.f32 %v1493, %v1594
        %v1688 = vadd.f32 %v1494, %v1596
        %v1689 = vadd.f32 %v1495, %v1598
        %v1690 = vadd.f32 %v1496, %v1600
        %v1691 = vadd.f32 %v1497, %v1602
        %v1692 = vadd.f32 %v1498, %v1604
        %v1693 = vadd.f32 %v1499, %v1606
        %v1694 = vadd.f32 %v1500, %v1608
        %v1695 = vadd.f32 %v1501, %v1610
        %v1696 = vadd.f32 %v1502, %v1612
        %v1697 = vadd.f32 %v1503, %v1614
        %v1698 = vadd.f32 %v1504, %v1616
        %v1699 = vadd.f32 %v1505, %v1618
        %v1700 = vadd.f32 %v1506, %v1620
        %v1701 = vadd.f32 %v1507, %v1622
        %v1702 = vadd.f32 %v1508, %v1624
        %v1703 = vadd.f32 %v1509, %v1626
        %v1704 = vadd.f32 %v1510, %v1628
        %v1705 = vadd.f32 %v1511, %v1630
        %v1706 = vadd.f32 %v1512, %v1632
        %v1707 = vadd.f32 %v1513, %v1634
        %v1708 = vadd.f32 %v1514, %v1636
        %v1709 = vadd.f32 %v1515, %v1638
        %v1710 = vadd.f32 %v1516, %v1640
        %v1711 = vadd.f32 %v1517, %v1642
        %v1712 = vadd.f32 %v1518, %v1644
        %v1713 = vadd.f32 %v1519, %v1646
        %v1714 = vadd.f32 %v1520, %v1648
        %v1715 = vadd.f32 %v1521, %v1650
        %v1716 = vadd.f32 %v1522, %v1652
        %1749 = vrot.lane.b32.xlu0 %v1685, 64
        %v1750 = vpop.permute.xlu0 %1749
        %1751 = vrot.lane.b32.xlu0 %v1686, 64
        %v1752 = vpop.permute.xlu0 %1751
        %1753 = vrot.lane.b32.xlu0 %v1687, 64
        %v1754 = vpop.permute.xlu0 %1753
        %1755 = vrot.lane.b32.xlu0 %v1688, 64
        %v1756 = vpop.permute.xlu0 %1755
        %1757 = vrot.lane.b32.xlu0 %v1689, 64
        %v1758 = vpop.permute.xlu0 %1757
        %1759 = vrot.lane.b32.xlu0 %v1690, 64
        %v1760 = vpop.permute.xlu0 %1759
        %1761 = vrot.lane.b32.xlu0 %v1691, 64
        %v1762 = vpop.permute.xlu0 %1761
        %1763 = vrot.lane.b32.xlu0 %v1692, 64
        %v1764 = vpop.permute.xlu0 %1763
        %1765 = vrot.lane.b32.xlu0 %v1693, 64
        %v1766 = vpop.permute.xlu0 %1765
        %1767 = vrot.lane.b32.xlu0 %v1694, 64
        %v1768 = vpop.permute.xlu0 %1767
        %1769 = vrot.lane.b32.xlu0 %v1695, 64
        %v1770 = vpop.permute.xlu0 %1769
        %1771 = vrot.lane.b32.xlu0 %v1696, 64
        %v1772 = vpop.permute.xlu0 %1771
        %1773 = vrot.lane.b32.xlu0 %v1697, 64
        %v1774 = vpop.permute.xlu0 %1773
        %1775 = vrot.lane.b32.xlu0 %v1698, 64
        %v1776 = vpop.permute.xlu0 %1775
        %1777 = vrot.lane.b32.xlu0 %v1699, 64
        %v1778 = vpop.permute.xlu0 %1777
        %1779 = vrot.lane.b32.xlu0 %v1700, 64
        %v1780 = vpop.permute.xlu0 %1779
        %1781 = vrot.lane.b32.xlu0 %v1701, 64
        %v1782 = vpop.permute.xlu0 %1781
        %1783 = vrot.lane.b32.xlu0 %v1702, 64
        %v1784 = vpop.permute.xlu0 %1783
        %1785 = vrot.lane.b32.xlu0 %v1703, 64
        %v1786 = vpop.permute.xlu0 %1785
        %1787 = vrot.lane.b32.xlu0 %v1704, 64
        %v1788 = vpop.permute.xlu0 %1787
        %1789 = vrot.lane.b32.xlu0 %v1705, 64
        %v1790 = vpop.permute.xlu0 %1789
        %1791 = vrot.lane.b32.xlu0 %v1706, 64
        %v1792 = vpop.permute.xlu0 %1791
        %1793 = vrot.lane.b32.xlu0 %v1707, 64
        %v1794 = vpop.permute.xlu0 %1793
        %1795 = vrot.lane.b32.xlu0 %v1708, 64
        %v1796 = vpop.permute.xlu0 %1795
        %1797 = vrot.lane.b32.xlu0 %v1709, 64
        %v1798 = vpop.permute.xlu0 %1797
        %1799 = vrot.lane.b32.xlu0 %v1710, 64
        %v1800 = vpop.permute.xlu0 %1799
        %1801 = vrot.lane.b32.xlu0 %v1711, 64
        %v1802 = vpop.permute.xlu0 %1801
        %1803 = vrot.lane.b32.xlu0 %v1712, 64
        %v1804 = vpop.permute.xlu0 %1803
        %1805 = vrot.lane.b32.xlu0 %v1713, 64
        %v1806 = vpop.permute.xlu0 %1805
        %1807 = vrot.lane.b32.xlu0 %v1714, 64
        %v1808 = vpop.permute.xlu0 %1807
        %1809 = vrot.lane.b32.xlu0 %v1715, 64
        %v1810 = vpop.permute.xlu0 %1809
        %1811 = vrot.lane.b32.xlu0 %v1716, 64
        %v1812 = vpop.permute.xlu0 %1811
        %vm1845 = vcmask 130048
        %v1846 = vsel %vm1845, %v1750, 0.0
        %1847 = vadd.xlane.f32.xlu0 %v1846
        %v1848 = vpop.xlane.xlu0 %1847
        %v1849 = vsel %vm1845, %v1752, 0.0
        %1850 = vadd.xlane.f32.xlu0 %v1849
        %v1851 = vpop.xlane.xlu0 %1850
        %v1852 = vsel %vm1845, %v1754, 0.0
        %1853 = vadd.xlane.f32.xlu0 %v1852
        %v1854 = vpop.xlane.xlu0 %1853
        %v1855 = vsel %vm1845, %v1756, 0.0
        %1856 = vadd.xlane.f32.xlu0 %v1855
        %v1857 = vpop.xlane.xlu0 %1856
        %v1858 = vsel %vm1845, %v1758, 0.0
        %1859 = vadd.xlane.f32.xlu0 %v1858
        %v1860 = vpop.xlane.xlu0 %1859
        %v1861 = vsel %vm1845, %v1760, 0.0
        %1862 = vadd.xlane.f32.xlu0 %v1861
        %v1863 = vpop.xlane.xlu0 %1862
        %v1864 = vsel %vm1845, %v1762, 0.0
        %1865 = vadd.xlane.f32.xlu0 %v1864
        %v1866 = vpop.xlane.xlu0 %1865
        %v1867 = vsel %vm1845, %v1764, 0.0
        %1868 = vadd.xlane.f32.xlu0 %v1867
        %v1869 = vpop.xlane.xlu0 %1868
        %v1870 = vsel %vm1845, %v1766, 0.0
        %1871 = vadd.xlane.f32.xlu0 %v1870
        %v1872 = vpop.xlane.xlu0 %1871
        %v1873 = vsel %vm1845, %v1768, 0.0
        %1874 = vadd.xlane.f32.xlu0 %v1873
        %v1875 = vpop.xlane.xlu0 %1874
        %v1876 = vsel %vm1845, %v1770, 0.0
        %1877 = vadd.xlane.f32.xlu0 %v1876
        %v1878 = vpop.xlane.xlu0 %1877
        %v1879 = vsel %vm1845, %v1772, 0.0
        %1880 = vadd.xlane.f32.xlu0 %v1879
        %v1881 = vpop.xlane.xlu0 %1880
        %v1882 = vsel %vm1845, %v1774, 0.0
        %1883 = vadd.xlane.f32.xlu0 %v1882
        %v1884 = vpop.xlane.xlu0 %1883
        %v1885 = vsel %vm1845, %v1776, 0.0
        %1886 = vadd.xlane.f32.xlu0 %v1885
        %v1887 = vpop.xlane.xlu0 %1886
        %v1888 = vsel %vm1845, %v1778, 0.0
        %1889 = vadd.xlane.f32.xlu0 %v1888
        %v1890 = vpop.xlane.xlu0 %1889
        %v1891 = vsel %vm1845, %v1780, 0.0
        %1892 = vadd.xlane.f32.xlu0 %v1891
        %v1893 = vpop.xlane.xlu0 %1892
        %v1894 = vsel %vm1845, %v1782, 0.0
        %1895 = vadd.xlane.f32.xlu0 %v1894
        %v1896 = vpop.xlane.xlu0 %1895
        %v1897 = vsel %vm1845, %v1784, 0.0
        %1898 = vadd.xlane.f32.xlu0 %v1897
        %v1899 = vpop.xlane.xlu0 %1898
        %v1900 = vsel %vm1845, %v1786, 0.0
        %1901 = vadd.xlane.f32.xlu0 %v1900
        %v1902 = vpop.xlane.xlu0 %1901
        %v1903 = vsel %vm1845, %v1788, 0.0
        %1904 = vadd.xlane.f32.xlu0 %v1903
        %v1905 = vpop.xlane.xlu0 %1904
        %v1906 = vsel %vm1845, %v1790, 0.0
        %1907 = vadd.xlane.f32.xlu0 %v1906
        %v1908 = vpop.xlane.xlu0 %1907
        %v1909 = vsel %vm1845, %v1792, 0.0
        %1910 = vadd.xlane.f32.xlu0 %v1909
        %v1911 = vpop.xlane.xlu0 %1910
        %v1912 = vsel %vm1845, %v1794, 0.0
        %1913 = vadd.xlane.f32.xlu0 %v1912
        %v1914 = vpop.xlane.xlu0 %1913
        %v1915 = vsel %vm1845, %v1796, 0.0
        %1916 = vadd.xlane.f32.xlu0 %v1915
        %v1917 = vpop.xlane.xlu0 %1916
        %v1918 = vsel %vm1845, %v1798, 0.0
        %1919 = vadd.xlane.f32.xlu0 %v1918
        %v1920 = vpop.xlane.xlu0 %1919
        %v1921 = vsel %vm1845, %v1800, 0.0
        %1922 = vadd.xlane.f32.xlu0 %v1921
        %v1923 = vpop.xlane.xlu0 %1922
        %v1924 = vsel %vm1845, %v1802, 0.0
        %1925 = vadd.xlane.f32.xlu0 %v1924
        %v1926 = vpop.xlane.xlu0 %1925
        %v1927 = vsel %vm1845, %v1804, 0.0
        %1928 = vadd.xlane.f32.xlu0 %v1927
        %v1929 = vpop.xlane.xlu0 %1928
        %v1930 = vsel %vm1845, %v1806, 0.0
        %1931 = vadd.xlane.f32.xlu0 %v1930
        %v1932 = vpop.xlane.xlu0 %1931
        %v1933 = vsel %vm1845, %v1808, 0.0
        %1934 = vadd.xlane.f32.xlu0 %v1933
        %v1935 = vpop.xlane.xlu0 %1934
        %v1936 = vsel %vm1845, %v1810, 0.0
        %1937 = vadd.xlane.f32.xlu0 %v1936
        %v1938 = vpop.xlane.xlu0 %1937
        %v1939 = vsel %vm1845, %v1812, 0.0
        %1940 = vadd.xlane.f32.xlu0 %v1939
        %v1941 = vpop.xlane.xlu0 %1940
        %v1974 = vperm.slane %v1848, 0
        %v1975 = vperm.slane %v1848, 1
        %v1976 = vperm.slane %v1848, 2
        %v1977 = vperm.slane %v1848, 3
        %v1978 = vperm.slane %v1848, 4
        %v1979 = vperm.slane %v1848, 5
        %v1980 = vperm.slane %v1848, 6
        %v1981 = vperm.slane %v1848, 7
        %v1982 = vperm.slane %v1851, 0
        %v1983 = vperm.slane %v1851, 1
        %v1984 = vperm.slane %v1851, 2
        %v1985 = vperm.slane %v1851, 3
        %v1986 = vperm.slane %v1851, 4
        %v1987 = vperm.slane %v1851, 5
        %v1988 = vperm.slane %v1851, 6
        %v1989 = vperm.slane %v1851, 7
        %v1990 = vperm.slane %v1854, 0
        %v1991 = vperm.slane %v1854, 1
        %v1992 = vperm.slane %v1854, 2
        %v1993 = vperm.slane %v1854, 3
        %v1994 = vperm.slane %v1854, 4
        %v1995 = vperm.slane %v1854, 5
        %v1996 = vperm.slane %v1854, 6
        %v1997 = vperm.slane %v1854, 7
        %v1998 = vperm.slane %v1857, 0
        %v1999 = vperm.slane %v1857, 1
        %v2000 = vperm.slane %v1857, 2
        %v2001 = vperm.slane %v1857, 3
        %v2002 = vperm.slane %v1857, 4
        %v2003 = vperm.slane %v1857, 5
        %v2004 = vperm.slane %v1857, 6
        %v2005 = vperm.slane %v1857, 7
        %v2006 = vperm.slane %v1860, 0
        %v2007 = vperm.slane %v1860, 1
        %v2008 = vperm.slane %v1860, 2
        %v2009 = vperm.slane %v1860, 3
        %v2010 = vperm.slane %v1860, 4
        %v2011 = vperm.slane %v1860, 5
        %v2012 = vperm.slane %v1860, 6
        %v2013 = vperm.slane %v1860, 7
        %v2014 = vperm.slane %v1863, 0
        %v2015 = vperm.slane %v1863, 1
        %v2016 = vperm.slane %v1863, 2
        %v2017 = vperm.slane %v1863, 3
        %v2018 = vperm.slane %v1863, 4
        %v2019 = vperm.slane %v1863, 5
        %v2020 = vperm.slane %v1863, 6
        %v2021 = vperm.slane %v1863, 7
        %v2022 = vperm.slane %v1866, 0
        %v2023 = vperm.slane %v1866, 1
        %v2024 = vperm.slane %v1866, 2
        %v2025 = vperm.slane %v1866, 3
        %v2026 = vperm.slane %v1866, 4
        %v2027 = vperm.slane %v1866, 5
        %v2028 = vperm.slane %v1866, 6
        %v2029 = vperm.slane %v1866, 7
        %v2030 = vperm.slane %v1869, 0
        %v2031 = vperm.slane %v1869, 1
        %v2032 = vperm.slane %v1869, 2
        %v2033 = vperm.slane %v1869, 3
        %v2034 = vperm.slane %v1869, 4
        %v2035 = vperm.slane %v1869, 5
        %v2036 = vperm.slane %v1869, 6
        %v2037 = vperm.slane %v1869, 7
        %v2038 = vperm.slane %v1872, 0
        %v2039 = vperm.slane %v1872, 1
        %v2040 = vperm.slane %v1872, 2
        %v2041 = vperm.slane %v1872, 3
        %v2042 = vperm.slane %v1872, 4
        %v2043 = vperm.slane %v1872, 5
        %v2044 = vperm.slane %v1872, 6
        %v2045 = vperm.slane %v1872, 7
        %v2046 = vperm.slane %v1875, 0
        %v2047 = vperm.slane %v1875, 1
        %v2048 = vperm.slane %v1875, 2
        %v2049 = vperm.slane %v1875, 3
        %v2050 = vperm.slane %v1875, 4
        %v2051 = vperm.slane %v1875, 5
        %v2052 = vperm.slane %v1875, 6
        %v2053 = vperm.slane %v1875, 7
        %v2054 = vperm.slane %v1878, 0
        %v2055 = vperm.slane %v1878, 1
        %v2056 = vperm.slane %v1878, 2
        %v2057 = vperm.slane %v1878, 3
        %v2058 = vperm.slane %v1878, 4
        %v2059 = vperm.slane %v1878, 5
        %v2060 = vperm.slane %v1878, 6
        %v2061 = vperm.slane %v1878, 7
        %v2062 = vperm.slane %v1881, 0
        %v2063 = vperm.slane %v1881, 1
        %v2064 = vperm.slane %v1881, 2
        %v2065 = vperm.slane %v1881, 3
        %v2066 = vperm.slane %v1881, 4
        %v2067 = vperm.slane %v1881, 5
        %v2068 = vperm.slane %v1881, 6
        %v2069 = vperm.slane %v1881, 7
        %v2070 = vperm.slane %v1884, 0
        %v2071 = vperm.slane %v1884, 1
        %v2072 = vperm.slane %v1884, 2
        %v2073 = vperm.slane %v1884, 3
        %v2074 = vperm.slane %v1884, 4
        %v2075 = vperm.slane %v1884, 5
        %v2076 = vperm.slane %v1884, 6
        %v2077 = vperm.slane %v1884, 7
        %v2078 = vperm.slane %v1887, 0
        %v2079 = vperm.slane %v1887, 1
        %v2080 = vperm.slane %v1887, 2
        %v2081 = vperm.slane %v1887, 3
        %v2082 = vperm.slane %v1887, 4
        %v2083 = vperm.slane %v1887, 5
        %v2084 = vperm.slane %v1887, 6
        %v2085 = vperm.slane %v1887, 7
        %v2086 = vperm.slane %v1890, 0
        %v2087 = vperm.slane %v1890, 1
        %v2088 = vperm.slane %v1890, 2
        %v2089 = vperm.slane %v1890, 3
        %v2090 = vperm.slane %v1890, 4
        %v2091 = vperm.slane %v1890, 5
        %v2092 = vperm.slane %v1890, 6
        %v2093 = vperm.slane %v1890, 7
        %v2094 = vperm.slane %v1893, 0
        %v2095 = vperm.slane %v1893, 1
        %v2096 = vperm.slane %v1893, 2
        %v2097 = vperm.slane %v1893, 3
        %v2098 = vperm.slane %v1893, 4
        %v2099 = vperm.slane %v1893, 5
        %v2100 = vperm.slane %v1893, 6
        %v2101 = vperm.slane %v1893, 7
        %v2102 = vperm.slane %v1896, 0
        %v2103 = vperm.slane %v1896, 1
        %v2104 = vperm.slane %v1896, 2
        %v2105 = vperm.slane %v1896, 3
        %v2106 = vperm.slane %v1896, 4
        %v2107 = vperm.slane %v1896, 5
        %v2108 = vperm.slane %v1896, 6
        %v2109 = vperm.slane %v1896, 7
        %v2110 = vperm.slane %v1899, 0
        %v2111 = vperm.slane %v1899, 1
        %v2112 = vperm.slane %v1899, 2
        %v2113 = vperm.slane %v1899, 3
        %v2114 = vperm.slane %v1899, 4
        %v2115 = vperm.slane %v1899, 5
        %v2116 = vperm.slane %v1899, 6
        %v2117 = vperm.slane %v1899, 7
        %v2118 = vperm.slane %v1902, 0
        %v2119 = vperm.slane %v1902, 1
        %v2120 = vperm.slane %v1902, 2
        %v2121 = vperm.slane %v1902, 3
        %v2122 = vperm.slane %v1902, 4
        %v2123 = vperm.slane %v1902, 5
        %v2124 = vperm.slane %v1902, 6
        %v2125 = vperm.slane %v1902, 7
        %v2126 = vperm.slane %v1905, 0
        %v2127 = vperm.slane %v1905, 1
        %v2128 = vperm.slane %v1905, 2
        %v2129 = vperm.slane %v1905, 3
        %v2130 = vperm.slane %v1905, 4
        %v2131 = vperm.slane %v1905, 5
        %v2132 = vperm.slane %v1905, 6
        %v2133 = vperm.slane %v1905, 7
        %v2134 = vperm.slane %v1908, 0
        %v2135 = vperm.slane %v1908, 1
        %v2136 = vperm.slane %v1908, 2
        %v2137 = vperm.slane %v1908, 3
        %v2138 = vperm.slane %v1908, 4
        %v2139 = vperm.slane %v1908, 5
        %v2140 = vperm.slane %v1908, 6
        %v2141 = vperm.slane %v1908, 7
        %v2142 = vperm.slane %v1911, 0
        %v2143 = vperm.slane %v1911, 1
        %v2144 = vperm.slane %v1911, 2
        %v2145 = vperm.slane %v1911, 3
        %v2146 = vperm.slane %v1911, 4
        %v2147 = vperm.slane %v1911, 5
        %v2148 = vperm.slane %v1911, 6
        %v2149 = vperm.slane %v1911, 7
        %v2150 = vperm.slane %v1914, 0
        %v2151 = vperm.slane %v1914, 1
        %v2152 = vperm.slane %v1914, 2
        %v2153 = vperm.slane %v1914, 3
        %v2154 = vperm.slane %v1914, 4
        %v2155 = vperm.slane %v1914, 5
        %v2156 = vperm.slane %v1914, 6
        %v2157 = vperm.slane %v1914, 7
        %v2158 = vperm.slane %v1917, 0
        %v2159 = vperm.slane %v1917, 1
        %v2160 = vperm.slane %v1917, 2
        %v2161 = vperm.slane %v1917, 3
        %v2162 = vperm.slane %v1917, 4
        %v2163 = vperm.slane %v1917, 5
        %v2164 = vperm.slane %v1917, 6
        %v2165 = vperm.slane %v1917, 7
        %v2166 = vperm.slane %v1920, 0
        %v2167 = vperm.slane %v1920, 1
        %v2168 = vperm.slane %v1920, 2
        %v2169 = vperm.slane %v1920, 3
        %v2170 = vperm.slane %v1920, 4
        %v2171 = vperm.slane %v1920, 5
        %v2172 = vperm.slane %v1920, 6
        %v2173 = vperm.slane %v1920, 7
        %v2174 = vperm.slane %v1923, 0
        %v2175 = vperm.slane %v1923, 1
        %v2176 = vperm.slane %v1923, 2
        %v2177 = vperm.slane %v1923, 3
        %v2178 = vperm.slane %v1923, 4
        %v2179 = vperm.slane %v1923, 5
        %v2180 = vperm.slane %v1923, 6
        %v2181 = vperm.slane %v1923, 7
        %v2182 = vperm.slane %v1926, 0
        %v2183 = vperm.slane %v1926, 1
        %v2184 = vperm.slane %v1926, 2
        %v2185 = vperm.slane %v1926, 3
        %v2186 = vperm.slane %v1926, 4
        %v2187 = vperm.slane %v1926, 5
        %v2188 = vperm.slane %v1926, 6
        %v2189 = vperm.slane %v1926, 7
        %v2190 = vperm.slane %v1929, 0
        %v2191 = vperm.slane %v1929, 1
        %v2192 = vperm.slane %v1929, 2
        %v2193 = vperm.slane %v1929, 3
        %v2194 = vperm.slane %v1929, 4
        %v2195 = vperm.slane %v1929, 5
        %v2196 = vperm.slane %v1929, 6
        %v2197 = vperm.slane %v1929, 7
        %v2198 = vperm.slane %v1932, 0
        %v2199 = vperm.slane %v1932, 1
        %v2200 = vperm.slane %v1932, 2
        %v2201 = vperm.slane %v1932, 3
        %v2202 = vperm.slane %v1932, 4
        %v2203 = vperm.slane %v1932, 5
        %v2204 = vperm.slane %v1932, 6
        %v2205 = vperm.slane %v1932, 7
        %v2206 = vperm.slane %v1935, 0
        %v2207 = vperm.slane %v1935, 1
        %v2208 = vperm.slane %v1935, 2
        %v2209 = vperm.slane %v1935, 3
        %v2210 = vperm.slane %v1935, 4
        %v2211 = vperm.slane %v1935, 5
        %v2212 = vperm.slane %v1935, 6
        %v2213 = vperm.slane %v1935, 7
        %v2214 = vperm.slane %v1938, 0
        %v2215 = vperm.slane %v1938, 1
        %v2216 = vperm.slane %v1938, 2
        %v2217 = vperm.slane %v1938, 3
        %v2218 = vperm.slane %v1938, 4
        %v2219 = vperm.slane %v1938, 5
        %v2220 = vperm.slane %v1938, 6
        %v2221 = vperm.slane %v1938, 7
        %v2222 = vperm.slane %v1941, 0
        %v2223 = vperm.slane %v1941, 1
        %v2224 = vperm.slane %v1941, 2
        %v2225 = vperm.slane %v1941, 3
        %v2226 = vperm.slane %v1941, 4
        %v2227 = vperm.slane %v1941, 5
        %v2228 = vperm.slane %v1941, 6
        %v2229 = vperm.slane %v1941, 7
        %2230 = vst [vmem:[#allocation1] ss:$9 sm:$0xff] %v1974
        %s2231 = scalar_lea.vmem [#allocation1], 1
        %2232 = vst [vmem:[%s2231] ss:$9 sm:$0xff] %v1975
        %s2233 = scalar_lea.vmem [#allocation1], 2
        %2234 = vst [vmem:[%s2233] ss:$9 sm:$0xff] %v1976
        %s2235 = scalar_lea.vmem [#allocation1], 3
        %2236 = vst [vmem:[%s2235] ss:$9 sm:$0xff] %v1977
        %s2237 = scalar_lea.vmem [#allocation1], 4
        %2238 = vst [vmem:[%s2237] ss:$9 sm:$0xff] %v1978
        %s2239 = scalar_lea.vmem [#allocation1], 5
        %2240 = vst [vmem:[%s2239] ss:$9 sm:$0xff] %v1979
        %s2241 = scalar_lea.vmem [#allocation1], 6
        %2242 = vst [vmem:[%s2241] ss:$9 sm:$0xff] %v1980
        %s2243 = scalar_lea.vmem [#allocation1], 7
        %2244 = vst [vmem:[%s2243] ss:$9 sm:$0xff] %v1981
        %v2245 = vld [vmem:[#allocation1] sm:$0xff]
        %2246 = vst [vmem:[#allocation1] ss:$9 sm:$0xff] %v1982
        %2247 = vst [vmem:[%s2231] ss:$9 sm:$0xff] %v1983
        %2248 = vst [vmem:[%s2233] ss:$9 sm:$0xff] %v1984
        %2249 = vst [vmem:[%s2235] ss:$9 sm:$0xff] %v1985
        %2250 = vst [vmem:[%s2237] ss:$9 sm:$0xff] %v1986
        %2251 = vst [vmem:[%s2239] ss:$9 sm:$0xff] %v1987
        %2252 = vst [vmem:[%s2241] ss:$9 sm:$0xff] %v1988
        %2253 = vst [vmem:[%s2243] ss:$9 sm:$0xff] %v1989
        %v2254 = vld [vmem:[#allocation1] sm:$0xff]
        %2255 = vst [vmem:[#allocation1] ss:$9 sm:$0xff] %v1990
        %2256 = vst [vmem:[%s2231] ss:$9 sm:$0xff] %v1991
        %2257 = vst [vmem:[%s2233] ss:$9 sm:$0xff] %v1992
        %2258 = vst [vmem:[%s2235] ss:$9 sm:$0xff] %v1993
        %2259 = vst [vmem:[%s2237] ss:$9 sm:$0xff] %v1994
        %2260 = vst [vmem:[%s2239] ss:$9 sm:$0xff] %v1995
        %2261 = vst [vmem:[%s2241] ss:$9 sm:$0xff] %v1996
        %2262 = vst [vmem:[%s2243] ss:$9 sm:$0xff] %v1997
        %v2263 = vld [vmem:[#allocation1] sm:$0xff]
        %2264 = vst [vmem:[#allocation1] ss:$9 sm:$0xff] %v1998
        %2265 = vst [vmem:[%s2231] ss:$9 sm:$0xff] %v1999
        %2266 = vst [vmem:[%s2233] ss:$9 sm:$0xff] %v2000
        %2267 = vst [vmem:[%s2235] ss:$9 sm:$0xff] %v2001
        %2268 = vst [vmem:[%s2237] ss:$9 sm:$0xff] %v2002
        %2269 = vst [vmem:[%s2239] ss:$9 sm:$0xff] %v2003
        %2270 = vst [vmem:[%s2241] ss:$9 sm:$0xff] %v2004
        %2271 = vst [vmem:[%s2243] ss:$9 sm:$0xff] %v2005
        %v2272 = vld [vmem:[#allocation1] sm:$0xff]
        %2273 = vst [vmem:[#allocation1] ss:$9 sm:$0xff] %v2006
        %2274 = vst [vmem:[%s2231] ss:$9 sm:$0xff] %v2007
        %2275 = vst [vmem:[%s2233] ss:$9 sm:$0xff] %v2008
        %2276 = vst [vmem:[%s2235] ss:$9 sm:$0xff] %v2009
        %2277 = vst [vmem:[%s2237] ss:$9 sm:$0xff] %v2010
        %2278 = vst [vmem:[%s2239] ss:$9 sm:$0xff] %v2011
        %2279 = vst [vmem:[%s2241] ss:$9 sm:$0xff] %v2012
        %2280 = vst [vmem:[%s2243] ss:$9 sm:$0xff] %v2013
        %v2281 = vld [vmem:[#allocation1] sm:$0xff]
        %2282 = vst [vmem:[#allocation1] ss:$9 sm:$0xff] %v2014
        %2283 = vst [vmem:[%s2231] ss:$9 sm:$0xff] %v2015
        %2284 = vst [vmem:[%s2233] ss:$9 sm:$0xff] %v2016
        %2285 = vst [vmem:[%s2235] ss:$9 sm:$0xff] %v2017
        %2286 = vst [vmem:[%s2237] ss:$9 sm:$0xff] %v2018
        %2287 = vst [vmem:[%s2239] ss:$9 sm:$0xff] %v2019
        %2288 = vst [vmem:[%s2241] ss:$9 sm:$0xff] %v2020
        %2289 = vst [vmem:[%s2243] ss:$9 sm:$0xff] %v2021
        %v2290 = vld [vmem:[#allocation1] sm:$0xff]
        %2291 = vst [vmem:[#allocation1] ss:$9 sm:$0xff] %v2022
        %2292 = vst [vmem:[%s2231] ss:$9 sm:$0xff] %v2023
        %2293 = vst [vmem:[%s2233] ss:$9 sm:$0xff] %v2024
        %2294 = vst [vmem:[%s2235] ss:$9 sm:$0xff] %v2025
        %2295 = vst [vmem:[%s2237] ss:$9 sm:$0xff] %v2026
        %2296 = vst [vmem:[%s2239] ss:$9 sm:$0xff] %v2027
        %2297 = vst [vmem:[%s2241] ss:$9 sm:$0xff] %v2028
        %2298 = vst [vmem:[%s2243] ss:$9 sm:$0xff] %v2029
        %v2299 = vld [vmem:[#allocation1] sm:$0xff]
        %2300 = vst [vmem:[#allocation1] ss:$9 sm:$0xff] %v2030
        %2301 = vst [vmem:[%s2231] ss:$9 sm:$0xff] %v2031
        %2302 = vst [vmem:[%s2233] ss:$9 sm:$0xff] %v2032
        %2303 = vst [vmem:[%s2235] ss:$9 sm:$0xff] %v2033
        %2304 = vst [vmem:[%s2237] ss:$9 sm:$0xff] %v2034
        %2305 = vst [vmem:[%s2239] ss:$9 sm:$0xff] %v2035
        %2306 = vst [vmem:[%s2241] ss:$9 sm:$0xff] %v2036
        %2307 = vst [vmem:[%s2243] ss:$9 sm:$0xff] %v2037
        %v2308 = vld [vmem:[#allocation1] sm:$0xff]
        %2309 = vst [vmem:[#allocation1] ss:$9 sm:$0xff] %v2038
        %2310 = vst [vmem:[%s2231] ss:$9 sm:$0xff] %v2039
        %2311 = vst [vmem:[%s2233] ss:$9 sm:$0xff] %v2040
        %2312 = vst [vmem:[%s2235] ss:$9 sm:$0xff] %v2041
        %2313 = vst [vmem:[%s2237] ss:$9 sm:$0xff] %v2042
        %2314 = vst [vmem:[%s2239] ss:$9 sm:$0xff] %v2043
        %2315 = vst [vmem:[%s2241] ss:$9 sm:$0xff] %v2044
        %2316 = vst [vmem:[%s2243] ss:$9 sm:$0xff] %v2045
        %v2317 = vld [vmem:[#allocation1] sm:$0xff]
        %2318 = vst [vmem:[#allocation1] ss:$9 sm:$0xff] %v2046
        %2319 = vst [vmem:[%s2231] ss:$9 sm:$0xff] %v2047
        %2320 = vst [vmem:[%s2233] ss:$9 sm:$0xff] %v2048
        %2321 = vst [vmem:[%s2235] ss:$9 sm:$0xff] %v2049
        %2322 = vst [vmem:[%s2237] ss:$9 sm:$0xff] %v2050
        %2323 = vst [vmem:[%s2239] ss:$9 sm:$0xff] %v2051
        %2324 = vst [vmem:[%s2241] ss:$9 sm:$0xff] %v2052
        %2325 = vst [vmem:[%s2243] ss:$9 sm:$0xff] %v2053
        %v2326 = vld [vmem:[#allocation1] sm:$0xff]
        %2327 = vst [vmem:[#allocation1] ss:$9 sm:$0xff] %v2054
        %2328 = vst [vmem:[%s2231] ss:$9 sm:$0xff] %v2055
        %2329 = vst [vmem:[%s2233] ss:$9 sm:$0xff] %v2056
        %2330 = vst [vmem:[%s2235] ss:$9 sm:$0xff] %v2057
        %2331 = vst [vmem:[%s2237] ss:$9 sm:$0xff] %v2058
        %2332 = vst [vmem:[%s2239] ss:$9 sm:$0xff] %v2059
        %2333 = vst [vmem:[%s2241] ss:$9 sm:$0xff] %v2060
        %2334 = vst [vmem:[%s2243] ss:$9 sm:$0xff] %v2061
        %v2335 = vld [vmem:[#allocation1] sm:$0xff]
        %2336 = vst [vmem:[#allocation1] ss:$9 sm:$0xff] %v2062
        %2337 = vst [vmem:[%s2231] ss:$9 sm:$0xff] %v2063
        %2338 = vst [vmem:[%s2233] ss:$9 sm:$0xff] %v2064
        %2339 = vst [vmem:[%s2235] ss:$9 sm:$0xff] %v2065
        %2340 = vst [vmem:[%s2237] ss:$9 sm:$0xff] %v2066
        %2341 = vst [vmem:[%s2239] ss:$9 sm:$0xff] %v2067
        %2342 = vst [vmem:[%s2241] ss:$9 sm:$0xff] %v2068
        %2343 = vst [vmem:[%s2243] ss:$9 sm:$0xff] %v2069
        %v2344 = vld [vmem:[#allocation1] sm:$0xff]
        %2345 = vst [vmem:[#allocation1] ss:$9 sm:$0xff] %v2070
        %2346 = vst [vmem:[%s2231] ss:$9 sm:$0xff] %v2071
        %2347 = vst [vmem:[%s2233] ss:$9 sm:$0xff] %v2072
        %2348 = vst [vmem:[%s2235] ss:$9 sm:$0xff] %v2073
        %2349 = vst [vmem:[%s2237] ss:$9 sm:$0xff] %v2074
        %2350 = vst [vmem:[%s2239] ss:$9 sm:$0xff] %v2075
        %2351 = vst [vmem:[%s2241] ss:$9 sm:$0xff] %v2076
        %2352 = vst [vmem:[%s2243] ss:$9 sm:$0xff] %v2077
        %v2353 = vld [vmem:[#allocation1] sm:$0xff]
        %2354 = vst [vmem:[#allocation1] ss:$9 sm:$0xff] %v2078
        %2355 = vst [vmem:[%s2231] ss:$9 sm:$0xff] %v2079
        %2356 = vst [vmem:[%s2233] ss:$9 sm:$0xff] %v2080
        %2357 = vst [vmem:[%s2235] ss:$9 sm:$0xff] %v2081
        %2358 = vst [vmem:[%s2237] ss:$9 sm:$0xff] %v2082
        %2359 = vst [vmem:[%s2239] ss:$9 sm:$0xff] %v2083
        %2360 = vst [vmem:[%s2241] ss:$9 sm:$0xff] %v2084
        %2361 = vst [vmem:[%s2243] ss:$9 sm:$0xff] %v2085
        %v2362 = vld [vmem:[#allocation1] sm:$0xff]
        %2363 = vst [vmem:[#allocation1] ss:$9 sm:$0xff] %v2086
        %2364 = vst [vmem:[%s2231] ss:$9 sm:$0xff] %v2087
        %2365 = vst [vmem:[%s2233] ss:$9 sm:$0xff] %v2088
        %2366 = vst [vmem:[%s2235] ss:$9 sm:$0xff] %v2089
        %2367 = vst [vmem:[%s2237] ss:$9 sm:$0xff] %v2090
        %2368 = vst [vmem:[%s2239] ss:$9 sm:$0xff] %v2091
        %2369 = vst [vmem:[%s2241] ss:$9 sm:$0xff] %v2092
        %2370 = vst [vmem:[%s2243] ss:$9 sm:$0xff] %v2093
        %v2371 = vld [vmem:[#allocation1] sm:$0xff]
        %2372 = vst [vmem:[#allocation1] ss:$9 sm:$0xff] %v2094
        %2373 = vst [vmem:[%s2231] ss:$9 sm:$0xff] %v2095
        %2374 = vst [vmem:[%s2233] ss:$9 sm:$0xff] %v2096
        %2375 = vst [vmem:[%s2235] ss:$9 sm:$0xff] %v2097
        %2376 = vst [vmem:[%s2237] ss:$9 sm:$0xff] %v2098
        %2377 = vst [vmem:[%s2239] ss:$9 sm:$0xff] %v2099
        %2378 = vst [vmem:[%s2241] ss:$9 sm:$0xff] %v2100
        %2379 = vst [vmem:[%s2243] ss:$9 sm:$0xff] %v2101
        %v2380 = vld [vmem:[#allocation1] sm:$0xff]
        %2381 = vst [vmem:[#allocation1] ss:$9 sm:$0xff] %v2102
        %2382 = vst [vmem:[%s2231] ss:$9 sm:$0xff] %v2103
        %2383 = vst [vmem:[%s2233] ss:$9 sm:$0xff] %v2104
        %2384 = vst [vmem:[%s2235] ss:$9 sm:$0xff] %v2105
        %2385 = vst [vmem:[%s2237] ss:$9 sm:$0xff] %v2106
        %2386 = vst [vmem:[%s2239] ss:$9 sm:$0xff] %v2107
        %2387 = vst [vmem:[%s2241] ss:$9 sm:$0xff] %v2108
        %2388 = vst [vmem:[%s2243] ss:$9 sm:$0xff] %v2109
        %v2389 = vld [vmem:[#allocation1] sm:$0xff]
        %2390 = vst [vmem:[#allocation1] ss:$9 sm:$0xff] %v2110
        %2391 = vst [vmem:[%s2231] ss:$9 sm:$0xff] %v2111
        %2392 = vst [vmem:[%s2233] ss:$9 sm:$0xff] %v2112
        %2393 = vst [vmem:[%s2235] ss:$9 sm:$0xff] %v2113
        %2394 = vst [vmem:[%s2237] ss:$9 sm:$0xff] %v2114
        %2395 = vst [vmem:[%s2239] ss:$9 sm:$0xff] %v2115
        %2396 = vst [vmem:[%s2241] ss:$9 sm:$0xff] %v2116
        %2397 = vst [vmem:[%s2243] ss:$9 sm:$0xff] %v2117
        %v2398 = vld [vmem:[#allocation1] sm:$0xff]
        %2399 = vst [vmem:[#allocation1] ss:$9 sm:$0xff] %v2118
        %2400 = vst [vmem:[%s2231] ss:$9 sm:$0xff] %v2119
        %2401 = vst [vmem:[%s2233] ss:$9 sm:$0xff] %v2120
        %2402 = vst [vmem:[%s2235] ss:$9 sm:$0xff] %v2121
        %2403 = vst [vmem:[%s2237] ss:$9 sm:$0xff] %v2122
        %2404 = vst [vmem:[%s2239] ss:$9 sm:$0xff] %v2123
        %2405 = vst [vmem:[%s2241] ss:$9 sm:$0xff] %v2124
        %2406 = vst [vmem:[%s2243] ss:$9 sm:$0xff] %v2125
        %v2407 = vld [vmem:[#allocation1] sm:$0xff]
        %2408 = vst [vmem:[#allocation1] ss:$9 sm:$0xff] %v2126
        %2409 = vst [vmem:[%s2231] ss:$9 sm:$0xff] %v2127
        %2410 = vst [vmem:[%s2233] ss:$9 sm:$0xff] %v2128
        %2411 = vst [vmem:[%s2235] ss:$9 sm:$0xff] %v2129
        %2412 = vst [vmem:[%s2237] ss:$9 sm:$0xff] %v2130
        %2413 = vst [vmem:[%s2239] ss:$9 sm:$0xff] %v2131
        %2414 = vst [vmem:[%s2241] ss:$9 sm:$0xff] %v2132
        %2415 = vst [vmem:[%s2243] ss:$9 sm:$0xff] %v2133
        %v2416 = vld [vmem:[#allocation1] sm:$0xff]
        %2417 = vst [vmem:[#allocation1] ss:$9 sm:$0xff] %v2134
        %2418 = vst [vmem:[%s2231] ss:$9 sm:$0xff] %v2135
        %2419 = vst [vmem:[%s2233] ss:$9 sm:$0xff] %v2136
        %2420 = vst [vmem:[%s2235] ss:$9 sm:$0xff] %v2137
        %2421 = vst [vmem:[%s2237] ss:$9 sm:$0xff] %v2138
        %2422 = vst [vmem:[%s2239] ss:$9 sm:$0xff] %v2139
        %2423 = vst [vmem:[%s2241] ss:$9 sm:$0xff] %v2140
        %2424 = vst [vmem:[%s2243] ss:$9 sm:$0xff] %v2141
        %v2425 = vld [vmem:[#allocation1] sm:$0xff]
        %2426 = vst [vmem:[#allocation1] ss:$9 sm:$0xff] %v2142
        %2427 = vst [vmem:[%s2231] ss:$9 sm:$0xff] %v2143
        %2428 = vst [vmem:[%s2233] ss:$9 sm:$0xff] %v2144
        %2429 = vst [vmem:[%s2235] ss:$9 sm:$0xff] %v2145
        %2430 = vst [vmem:[%s2237] ss:$9 sm:$0xff] %v2146
        %2431 = vst [vmem:[%s2239] ss:$9 sm:$0xff] %v2147
        %2432 = vst [vmem:[%s2241] ss:$9 sm:$0xff] %v2148
        %2433 = vst [vmem:[%s2243] ss:$9 sm:$0xff] %v2149
        %v2434 = vld [vmem:[#allocation1] sm:$0xff]
        %2435 = vst [vmem:[#allocation1] ss:$9 sm:$0xff] %v2150
        %2436 = vst [vmem:[%s2231] ss:$9 sm:$0xff] %v2151
        %2437 = vst [vmem:[%s2233] ss:$9 sm:$0xff] %v2152
        %2438 = vst [vmem:[%s2235] ss:$9 sm:$0xff] %v2153
        %2439 = vst [vmem:[%s2237] ss:$9 sm:$0xff] %v2154
        %2440 = vst [vmem:[%s2239] ss:$9 sm:$0xff] %v2155
        %2441 = vst [vmem:[%s2241] ss:$9 sm:$0xff] %v2156
        %2442 = vst [vmem:[%s2243] ss:$9 sm:$0xff] %v2157
        %v2443 = vld [vmem:[#allocation1] sm:$0xff]
        %2444 = vst [vmem:[#allocation1] ss:$9 sm:$0xff] %v2158
        %2445 = vst [vmem:[%s2231] ss:$9 sm:$0xff] %v2159
        %2446 = vst [vmem:[%s2233] ss:$9 sm:$0xff] %v2160
        %2447 = vst [vmem:[%s2235] ss:$9 sm:$0xff] %v2161
        %2448 = vst [vmem:[%s2237] ss:$9 sm:$0xff] %v2162
        %2449 = vst [vmem:[%s2239] ss:$9 sm:$0xff] %v2163
        %2450 = vst [vmem:[%s2241] ss:$9 sm:$0xff] %v2164
        %2451 = vst [vmem:[%s2243] ss:$9 sm:$0xff] %v2165
        %v2452 = vld [vmem:[#allocation1] sm:$0xff]
        %2453 = vst [vmem:[#allocation1] ss:$9 sm:$0xff] %v2166
        %2454 = vst [vmem:[%s2231] ss:$9 sm:$0xff] %v2167
        %2455 = vst [vmem:[%s2233] ss:$9 sm:$0xff] %v2168
        %2456 = vst [vmem:[%s2235] ss:$9 sm:$0xff] %v2169
        %2457 = vst [vmem:[%s2237] ss:$9 sm:$0xff] %v2170
        %2458 = vst [vmem:[%s2239] ss:$9 sm:$0xff] %v2171
        %2459 = vst [vmem:[%s2241] ss:$9 sm:$0xff] %v2172
        %2460 = vst [vmem:[%s2243] ss:$9 sm:$0xff] %v2173
        %v2461 = vld [vmem:[#allocation1] sm:$0xff]
        %2462 = vst [vmem:[#allocation1] ss:$9 sm:$0xff] %v2174
        %2463 = vst [vmem:[%s2231] ss:$9 sm:$0xff] %v2175
        %2464 = vst [vmem:[%s2233] ss:$9 sm:$0xff] %v2176
        %2465 = vst [vmem:[%s2235] ss:$9 sm:$0xff] %v2177
        %2466 = vst [vmem:[%s2237] ss:$9 sm:$0xff] %v2178
        %2467 = vst [vmem:[%s2239] ss:$9 sm:$0xff] %v2179
        %2468 = vst [vmem:[%s2241] ss:$9 sm:$0xff] %v2180
        %2469 = vst [vmem:[%s2243] ss:$9 sm:$0xff] %v2181
        %v2470 = vld [vmem:[#allocation1] sm:$0xff]
        %2471 = vst [vmem:[#allocation1] ss:$9 sm:$0xff] %v2182
        %2472 = vst [vmem:[%s2231] ss:$9 sm:$0xff] %v2183
        %2473 = vst [vmem:[%s2233] ss:$9 sm:$0xff] %v2184
        %2474 = vst [vmem:[%s2235] ss:$9 sm:$0xff] %v2185
        %2475 = vst [vmem:[%s2237] ss:$9 sm:$0xff] %v2186
        %2476 = vst [vmem:[%s2239] ss:$9 sm:$0xff] %v2187
        %2477 = vst [vmem:[%s2241] ss:$9 sm:$0xff] %v2188
        %2478 = vst [vmem:[%s2243] ss:$9 sm:$0xff] %v2189
        %v2479 = vld [vmem:[#allocation1] sm:$0xff]
        %2480 = vst [vmem:[#allocation1] ss:$9 sm:$0xff] %v2190
        %2481 = vst [vmem:[%s2231] ss:$9 sm:$0xff] %v2191
        %2482 = vst [vmem:[%s2233] ss:$9 sm:$0xff] %v2192
        %2483 = vst [vmem:[%s2235] ss:$9 sm:$0xff] %v2193
        %2484 = vst [vmem:[%s2237] ss:$9 sm:$0xff] %v2194
        %2485 = vst [vmem:[%s2239] ss:$9 sm:$0xff] %v2195
        %2486 = vst [vmem:[%s2241] ss:$9 sm:$0xff] %v2196
        %2487 = vst [vmem:[%s2243] ss:$9 sm:$0xff] %v2197
        %v2488 = vld [vmem:[#allocation1] sm:$0xff]
        %2489 = vst [vmem:[#allocation1] ss:$9 sm:$0xff] %v2198
        %2490 = vst [vmem:[%s2231] ss:$9 sm:$0xff] %v2199
        %2491 = vst [vmem:[%s2233] ss:$9 sm:$0xff] %v2200
        %2492 = vst [vmem:[%s2235] ss:$9 sm:$0xff] %v2201
        %2493 = vst [vmem:[%s2237] ss:$9 sm:$0xff] %v2202
        %2494 = vst [vmem:[%s2239] ss:$9 sm:$0xff] %v2203
        %2495 = vst [vmem:[%s2241] ss:$9 sm:$0xff] %v2204
        %2496 = vst [vmem:[%s2243] ss:$9 sm:$0xff] %v2205
        %v2497 = vld [vmem:[#allocation1] sm:$0xff]
        %2498 = vst [vmem:[#allocation1] ss:$9 sm:$0xff] %v2206
        %2499 = vst [vmem:[%s2231] ss:$9 sm:$0xff] %v2207
        %2500 = vst [vmem:[%s2233] ss:$9 sm:$0xff] %v2208
        %2501 = vst [vmem:[%s2235] ss:$9 sm:$0xff] %v2209
        %2502 = vst [vmem:[%s2237] ss:$9 sm:$0xff] %v2210
        %2503 = vst [vmem:[%s2239] ss:$9 sm:$0xff] %v2211
        %2504 = vst [vmem:[%s2241] ss:$9 sm:$0xff] %v2212
        %2505 = vst [vmem:[%s2243] ss:$9 sm:$0xff] %v2213
        %v2506 = vld [vmem:[#allocation1] sm:$0xff]
        %2507 = vst [vmem:[#allocation1] ss:$9 sm:$0xff] %v2214
        %2508 = vst [vmem:[%s2231] ss:$9 sm:$0xff] %v2215
        %2509 = vst [vmem:[%s2233] ss:$9 sm:$0xff] %v2216
        %2510 = vst [vmem:[%s2235] ss:$9 sm:$0xff] %v2217
        %2511 = vst [vmem:[%s2237] ss:$9 sm:$0xff] %v2218
        %2512 = vst [vmem:[%s2239] ss:$9 sm:$0xff] %v2219
        %2513 = vst [vmem:[%s2241] ss:$9 sm:$0xff] %v2220
        %2514 = vst [vmem:[%s2243] ss:$9 sm:$0xff] %v2221
        %v2515 = vld [vmem:[#allocation1] sm:$0xff]
        %2516 = vst [vmem:[#allocation1] ss:$9 sm:$0xff] %v2222
        %2517 = vst [vmem:[%s2231] ss:$9 sm:$0xff] %v2223
        %2518 = vst [vmem:[%s2233] ss:$9 sm:$0xff] %v2224
        %2519 = vst [vmem:[%s2235] ss:$9 sm:$0xff] %v2225
        %2520 = vst [vmem:[%s2237] ss:$9 sm:$0xff] %v2226
        %2521 = vst [vmem:[%s2239] ss:$9 sm:$0xff] %v2227
        %2522 = vst [vmem:[%s2241] ss:$9 sm:$0xff] %v2228
        %2523 = vst [vmem:[%s2243] ss:$9 sm:$0xff] %v2229
        %v2524 = vld [vmem:[#allocation1] sm:$0xff]
        %2525 = vset.pattern.permute.xlu0 0
        %2526 = vperm.xlu0 %2525, %v2245
        %v2527 = vpop.permute.xlu0 %2526
        %2528 = vset.pattern.permute.xlu0 0
        %2529 = vperm.xlu0 %2528, %v2254
        %v2530 = vpop.permute.xlu0 %2529
        %2531 = vset.pattern.permute.xlu0 0
        %2532 = vperm.xlu0 %2531, %v2263
        %v2533 = vpop.permute.xlu0 %2532
        %2534 = vset.pattern.permute.xlu0 0
        %2535 = vperm.xlu0 %2534, %v2272
        %v2536 = vpop.permute.xlu0 %2535
        %2537 = vset.pattern.permute.xlu0 0
        %2538 = vperm.xlu0 %2537, %v2281
        %v2539 = vpop.permute.xlu0 %2538
        %2540 = vset.pattern.permute.xlu0 0
        %2541 = vperm.xlu0 %2540, %v2290
        %v2542 = vpop.permute.xlu0 %2541
        %2543 = vset.pattern.permute.xlu0 0
        %2544 = vperm.xlu0 %2543, %v2299
        %v2545 = vpop.permute.xlu0 %2544
        %2546 = vset.pattern.permute.xlu0 0
        %2547 = vperm.xlu0 %2546, %v2308
        %v2548 = vpop.permute.xlu0 %2547
        %2549 = vset.pattern.permute.xlu0 0
        %2550 = vperm.xlu0 %2549, %v2317
        %v2551 = vpop.permute.xlu0 %2550
        %2552 = vset.pattern.permute.xlu0 0
        %2553 = vperm.xlu0 %2552, %v2326
        %v2554 = vpop.permute.xlu0 %2553
        %2555 = vset.pattern.permute.xlu0 0
        %2556 = vperm.xlu0 %2555, %v2335
        %v2557 = vpop.permute.xlu0 %2556
        %2558 = vset.pattern.permute.xlu0 0
        %2559 = vperm.xlu0 %2558, %v2344
        %v2560 = vpop.permute.xlu0 %2559
        %2561 = vset.pattern.permute.xlu0 0
        %2562 = vperm.xlu0 %2561, %v2353
        %v2563 = vpop.permute.xlu0 %2562
        %2564 = vset.pattern.permute.xlu0 0
        %2565 = vperm.xlu0 %2564, %v2362
        %v2566 = vpop.permute.xlu0 %2565
        %2567 = vset.pattern.permute.xlu0 0
        %2568 = vperm.xlu0 %2567, %v2371
        %v2569 = vpop.permute.xlu0 %2568
        %2570 = vset.pattern.permute.xlu0 0
        %2571 = vperm.xlu0 %2570, %v2380
        %v2572 = vpop.permute.xlu0 %2571
        %2573 = vset.pattern.permute.xlu0 0
        %2574 = vperm.xlu0 %2573, %v2389
        %v2575 = vpop.permute.xlu0 %2574
        %2576 = vset.pattern.permute.xlu0 0
        %2577 = vperm.xlu0 %2576, %v2398
        %v2578 = vpop.permute.xlu0 %2577
        %2579 = vset.pattern.permute.xlu0 0
        %2580 = vperm.xlu0 %2579, %v2407
        %v2581 = vpop.permute.xlu0 %2580
        %2582 = vset.pattern.permute.xlu0 0
        %2583 = vperm.xlu0 %2582, %v2416
        %v2584 = vpop.permute.xlu0 %2583
        %2585 = vset.pattern.permute.xlu0 0
        %2586 = vperm.xlu0 %2585, %v2425
        %v2587 = vpop.permute.xlu0 %2586
        %2588 = vset.pattern.permute.xlu0 0
        %2589 = vperm.xlu0 %2588, %v2434
        %v2590 = vpop.permute.xlu0 %2589
        %2591 = vset.pattern.permute.xlu0 0
        %2592 = vperm.xlu0 %2591, %v2443
        %v2593 = vpop.permute.xlu0 %2592
        %2594 = vset.pattern.permute.xlu0 0
        %2595 = vperm.xlu0 %2594, %v2452
        %v2596 = vpop.permute.xlu0 %2595
        %2597 = vset.pattern.permute.xlu0 0
        %2598 = vperm.xlu0 %2597, %v2461
        %v2599 = vpop.permute.xlu0 %2598
        %2600 = vset.pattern.permute.xlu0 0
        %2601 = vperm.xlu0 %2600, %v2470
        %v2602 = vpop.permute.xlu0 %2601
        %2603 = vset.pattern.permute.xlu0 0
        %2604 = vperm.xlu0 %2603, %v2479
        %v2605 = vpop.permute.xlu0 %2604
        %2606 = vset.pattern.permute.xlu0 0
        %2607 = vperm.xlu0 %2606, %v2488
        %v2608 = vpop.permute.xlu0 %2607
        %2609 = vset.pattern.permute.xlu0 0
        %2610 = vperm.xlu0 %2609, %v2497
        %v2611 = vpop.permute.xlu0 %2610
        %2612 = vset.pattern.permute.xlu0 0
        %2613 = vperm.xlu0 %2612, %v2506
        %v2614 = vpop.permute.xlu0 %2613
        %2615 = vset.pattern.permute.xlu0 0
        %2616 = vperm.xlu0 %2615, %v2515
        %v2617 = vpop.permute.xlu0 %2616
        %2618 = vset.pattern.permute.xlu0 0
        %2619 = vperm.xlu0 %2618, %v2524
        %v2620 = vpop.permute.xlu0 %2619
        %v2621 = vlaneseq
        %v2622 = vand.u32 %v2621, 127
        %v2623 = vperm.slane %v2527, %v2622
        %v2624 = vadd.s32 %v2622, 4294967288
        %v2625 = vperm.slane %v2530, %v2624
        %vm2626 = vcmask 130112
        %v2627 = vsel %vm2626, %v2625, %v2623
        %v2628 = vadd.s32 %v2622, 4294967280
        %v2629 = vperm.slane %v2533, %v2628
        %vm2630 = vcmask 195712
        %v2631 = vsel %vm2630, %v2629, %v2627
        %v2632 = vadd.s32 %v2622, 4294967272
        %v2633 = vperm.slane %v2536, %v2632
        %vm2634 = vcmask 261312
        %v2635 = vsel %vm2634, %v2633, %v2631
        %v2636 = vadd.s32 %v2622, 4294967264
        %v2637 = vperm.slane %v2539, %v2636
        %vm2638 = vcmask 326912
        %v2639 = vsel %vm2638, %v2637, %v2635
        %v2640 = vadd.s32 %v2622, 4294967256
        %v2641 = vperm.slane %v2542, %v2640
        %vm2642 = vcmask 392512
        %v2643 = vsel %vm2642, %v2641, %v2639
        %v2644 = vadd.s32 %v2622, 4294967248
        %v2645 = vperm.slane %v2545, %v2644
        %vm2646 = vcmask 458112
        %v2647 = vsel %vm2646, %v2645, %v2643
        %v2648 = vadd.s32 %v2622, 4294967240
        %v2649 = vperm.slane %v2548, %v2648
        %vm2650 = vcmask 523712
        %v2651 = vsel %vm2650, %v2649, %v2647
        %v2652 = vadd.s32 %v2622, 4294967232
        %v2653 = vperm.slane %v2551, %v2652
        %vm2654 = vcmask 589312
        %v2655 = vsel %vm2654, %v2653, %v2651
        %v2656 = vadd.s32 %v2622, 4294967224
        %v2657 = vperm.slane %v2554, %v2656
        %vm2658 = vcmask 654912
        %v2659 = vsel %vm2658, %v2657, %v2655
        %v2660 = vadd.s32 %v2622, 4294967216
        %v2661 = vperm.slane %v2557, %v2660
        %vm2662 = vcmask 720512
        %v2663 = vsel %vm2662, %v2661, %v2659
        %v2664 = vadd.s32 %v2622, 4294967208
        %v2665 = vperm.slane %v2560, %v2664
        %vm2666 = vcmask 786112
        %v2667 = vsel %vm2666, %v2665, %v2663
        %v2668 = vadd.s32 %v2622, 4294967200
        %v2669 = vperm.slane %v2563, %v2668
        %vm2670 = vcmask 851712
        %v2671 = vsel %vm2670, %v2669, %v2667
        %v2672 = vadd.s32 %v2622, 4294967192
        %v2673 = vperm.slane %v2566, %v2672
        %vm2674 = vcmask 917312
        %v2675 = vsel %vm2674, %v2673, %v2671
        %v2676 = vadd.s32 %v2622, 4294967184
        %v2677 = vperm.slane %v2569, %v2676
        %vm2678 = vcmask 982912
        %v2679 = vsel %vm2678, %v2677, %v2675
        %v2680 = vadd.s32 %v2622, 4294967176
        %v2681 = vperm.slane %v2572, %v2680
        %vm2682 = vcmask 1048512
        %v2683 = vsel %vm2682, %v2681, %v2679
        %v2684 = vperm.slane %v2575, %v2622
        %v2685 = vperm.slane %v2578, %v2624
        %v2686 = vsel %vm2626, %v2685, %v2684
        %v2687 = vperm.slane %v2581, %v2628
        %v2688 = vsel %vm2630, %v2687, %v2686
        %v2689 = vperm.slane %v2584, %v2632
        %v2690 = vsel %vm2634, %v2689, %v2688
        %v2691 = vperm.slane %v2587, %v2636
        %v2692 = vsel %vm2638, %v2691, %v2690
        %v2693 = vperm.slane %v2590, %v2640
        %v2694 = vsel %vm2642, %v2693, %v2692
        %v2695 = vperm.slane %v2593, %v2644
        %v2696 = vsel %vm2646, %v2695, %v2694
        %v2697 = vperm.slane %v2596, %v2648
        %v2698 = vsel %vm2650, %v2697, %v2696
        %v2699 = vperm.slane %v2599, %v2652
        %v2700 = vsel %vm2654, %v2699, %v2698
        %v2701 = vperm.slane %v2602, %v2656
        %v2702 = vsel %vm2658, %v2701, %v2700
        %v2703 = vperm.slane %v2605, %v2660
        %v2704 = vsel %vm2662, %v2703, %v2702
        %v2705 = vperm.slane %v2608, %v2664
        %v2706 = vsel %vm2666, %v2705, %v2704
        %v2707 = vperm.slane %v2611, %v2668
        %v2708 = vsel %vm2670, %v2707, %v2706
        %v2709 = vperm.slane %v2614, %v2672
        %v2710 = vsel %vm2674, %v2709, %v2708
        %v2711 = vperm.slane %v2617, %v2676
        %v2712 = vsel %vm2678, %v2711, %v2710
        %v2713 = vperm.slane %v2620, %v2680
        %v2714 = vsel %vm2682, %v2713, %v2712
        %v2715 = vrot.slane %v2714, 7
        %vm2716 = vcmask 1040384
        %v2717 = vsel %vm2716, %v2683, %v2715
        %v2719 = vlaneseq
        %vm2720 = vcmp.ge.s32.totalorder %v2719, 0
        %vm2721 = vcmp.lt.s32.totalorder %v2719, 256
        %vm2722 = vmand %vm2720, %vm2721
        %2723 = vst.msk [vmem:[%s369] sm:$0x3] %vm2722, %v2717
        %s2724 = sand.u32 %s252, 1
        %s2725 = scalar_lea.sflag [#allocation3], %s2724
        %s2726 = sand.u32 %s252, 1
        %s2727 = smul.addr %s2726, 2
        %s2728 = scalar_lea.vmem [#allocation2], %s2727
        // Predicated region
        $region61: #{tpu_custom_call.1} parent=59 // pred_check
          %p2729 = pneg %p262
        $region62: #{tpu_custom_call.1} parent=59 // pred_check_branch
          %2731 = sbr.rel (%p2729) target = $region64
        $region63: #{tpu_custom_call.1} parent=59 // pred_region
          %s2732 = smul.u32 2, %s24
          %2734 = vsyncadd %s2725, 0
          %s2735 = scalar_lea.hbm %s10, %s2732
          %s2737 = sshll.u32 %s2728, 4
          %s2738 = int_to_ptr.vmem [resolvable:$true] %s2737
          %s2739 = sshll.u32 %s2735, 4
          %s2740 = int_to_ptr.hbm [resolvable:$true] %s2739
          %2742 = dma.vmem_to_hbm [thread:$0]  %s2738, 32, %s2740, %s2725
        $region64: #{tpu_custom_call.1} parent=59 // pred_fallthru
          _
      $region60: #{tpu_custom_call.1} parent=5 // pred_fallthru
        _
      %p2743 = scmp.le.s32.totalorder 2, %s19
      // Predicated region
      $region65: #{tpu_custom_call.1} parent=5 // pred_check
        %p2744 = pneg %p2743
      $region66: #{tpu_custom_call.1} parent=5 // pred_check_branch
        %2746 = sbr.rel (%p2744) target = $region68
      $region67: #{tpu_custom_call.1} parent=5 // pred_region
        %s2747 = ssub.s32 %s19, 2
        // Predicated region
        $region69: #{tpu_custom_call.1} parent=67 // pred_check
          %p2748 = pneg %p268
        $region70: #{tpu_custom_call.1} parent=67 // pred_check_branch
          %2750 = sbr.rel (%p2748) target = $region72
        $region71: #{tpu_custom_call.1} parent=67 // pred_region
          %s2751 = sand.u32 %s253, 1
          %s2752 = scalar_lea.sflag [#allocation3], %s2751
          %s2753 = sand.u32 %s253, 1
          %s2754 = smul.addr %s2753, 2
          %s2755 = scalar_lea.vmem [#allocation2], %s2754
          %2757 = dma.done %s2752, 32
        $region72: #{tpu_custom_call.1} parent=67 // pred_fallthru
          _
      $region68: #{tpu_custom_call.1} parent=5 // pred_fallthru
        _
    $region6: #{tpu_custom_call.1} parent=1 // loop_footer
      %s23 = sadd.s32 1, %s19
    $region7: #{tpu_custom_call.1} parent=1 // loop_footer_branch
      %18 = sbr.rel target = $region3
    $region8: #{tpu_custom_call.1} parent=1 // loop_exit
      _
    %2758 = vsyncpa [#allocation3], 1
    %s2759 = scalar_lea.sflag [#allocation3], 1
    %2760 = vsyncpa %s2759, 1

</llo_original>
